<compile_context>
chip_gen: v7x
topology: tpu7x:2x2x1
jax: 0.10.0
libtpu: 0.0.40
codegen_flags: <defaults>
</compile_context>

<pallas_src>
import jax
import jax.numpy as jnp
from jax import lax
from jax.experimental import pallas as pl
from jax.experimental.pallas import tpu as pltpu

# ---- GlyphGroupCNN default hyperparameters ----
KERNEL_SIZE = 5
FONT_CHANNELS = 1
NUM_FEATURES = 8 * 12 * 4          # 384 output channels
FINAL_W = 2
GROUPS = 16
MID_GROUPS = max(GROUPS // 2, 1)   # 8
MID_CH = NUM_FEATURES // 4         # 96
MID_PAD = 128                      # downsample channels padded 96 -> 128 (lane aligned)

# ---- geometry ----
B = 2
H = W = 16
OH = H - KERNEL_SIZE + 1           # 12
OW = W - KERNEL_SIZE + 1           # 12
POOL_H = OH // FINAL_W             # 6
POOL_W = OW // FINAL_W             # 6
NPOOL = FINAL_W * FINAL_W          # 4 pool windows
POOL_ROWS = 40                     # 36 rows per pool window, padded (duplicates) to 8-multiple
K_RAW = FONT_CHANNELS * KERNEL_SIZE * KERNEL_SIZE   # 25
K_PAD = 32                         # im2col K padded to a sublane multiple only


def glyph_group_cnn_kernel(patches_ref, w1_ref, b1_ref, wd_ref, bd_ref,
                           wr_ref, br_ref, out_ref, dflat_ref):
    bt = out_ref.shape[0]                                  # images in this block

    # conv1 as a single im2col matmul + bias + ReLU : (bt*160, 384)
    h = jnp.dot(patches_ref[...], w1_ref[...],
                preferred_element_type=jnp.float32)
    h = jnp.maximum(h + b1_ref[...], 0.0)

    # AdaptiveMaxPool2d((2,2)): rows are pre-grouped per (pool window, image)
    # with 40 rows each (36 real + 4 duplicates) -> aligned sublane reduction.
    # Row order inside the block: s*(bt*40) + n*40 + r  =>  group = s*bt + n.
    pooled = jnp.max(h.reshape(NPOOL * bt, POOL_ROWS, NUM_FEATURES), axis=1)
    # pooled: (4*bt, 384), rows s-major.

    # downsample: grouped 1x1 conv as block-diagonal matmul (output padded to 128 ch)
    d = jnp.dot(pooled, wd_ref[...],
                preferred_element_type=jnp.float32) + bd_ref[...]   # (4*bt, 128)

    # Relayout (s, n, c) -> (n, s*128 + c) through a tiny VMEM scratch using
    # lane-aligned static-slice stores, so reweight_conv becomes ONE matmul.
    for s in range(NPOOL):
        dflat_ref[:, s * MID_PAD:(s + 1) * MID_PAD] = d[s * bt:(s + 1) * bt, :]

    # reweight_conv: 2x2 grouped conv on the 2x2 pooled map, fused to a single
    # (bt, 512) x (512, 384) matmul + bias + ReLU.
    out_ref[...] = jnp.maximum(
        jnp.dot(dflat_ref[...], wr_ref[...],
                preferred_element_type=jnp.float32) + br_ref[...], 0.0)


def glyph_group_cnn(x, w1, b1, wd, bd, wr, br, batch_tile=None):
    """x: (B, 1, H, W) NCHW float32. Weights in PyTorch OIHW layout."""
    b = x.shape[0]
    # Batch tile: one big step for small B; cap at 16 images/step (keeps the
    # conv1 activation + double-buffered patches far below the default scoped
    # VMEM on every generation).  On v7x pass batch_tile=ceil(B/2) to give the
    # two TensorCores one grid step each.
    bt = batch_tile if batch_tile is not None else min(b, 16)
    nb = -(-b // bt)                       # number of grid steps
    bp = nb * bt                           # padded batch
    if bp != b:
        x = jnp.pad(x, ((0, bp - b), (0, 0), (0, 0), (0, 0)))

    # ---- im2col, rows grouped per 2x2 adaptive-max-pool window ----
    cols = jnp.stack(
        [x[:, 0, kh:kh + OH, kw:kw + OW]
         for kh in range(KERNEL_SIZE) for kw in range(KERNEL_SIZE)],
        axis=-1)                                           # (Bp, 12, 12, 25)
    cols = cols.reshape(bp, FINAL_W, POOL_H, FINAL_W, POOL_W, K_RAW)
    cols = cols.transpose(0, 1, 3, 2, 4, 5)                # (Bp, 2, 2, 6, 6, 25)
    cols = cols.reshape(bp, NPOOL, POOL_H * POOL_W, K_RAW)  # (Bp, 4, 36, 25)
    # Pad each pool group 36 -> 40 rows with DUPLICATE rows (max-safe for any bias).
    cols = jnp.concatenate(
        [cols, cols[:, :, :POOL_ROWS - POOL_H * POOL_W, :]], axis=2)  # (Bp,4,40,25)
    cols = jnp.pad(cols, ((0, 0), (0, 0), (0, 0), (0, K_PAD - K_RAW)))
    # Row layout per grid block: s-major, then image, then row-in-window.
    patches = cols.reshape(nb, bt, NPOOL, POOL_ROWS, K_PAD)
    patches = patches.transpose(0, 2, 1, 3, 4).reshape(
        bp * NPOOL * POOL_ROWS, K_PAD)                     # (Bp*160, 32)

    # conv1 weight (384,1,5,5) -> (25, 384) -> (32, 384)
    w1_mat = jnp.pad(w1.reshape(NUM_FEATURES, K_RAW).T,
                     ((0, K_PAD - K_RAW), (0, 0)))

    # downsample grouped 1x1 conv (96,48,1,1) -> block-diagonal (384, 128)
    in_pg = NUM_FEATURES // MID_GROUPS     # 48
    out_pg = MID_CH // MID_GROUPS          # 12
    wd_dense = jnp.zeros((NUM_FEATURES, MID_PAD), jnp.float32)
    for g in range(MID_GROUPS):
        wd_dense = wd_dense.at[g * in_pg:(g + 1) * in_pg,
                               g * out_pg:(g + 1) * out_pg].set(
            wd[g * out_pg:(g + 1) * out_pg, :, 0, 0].T)

    # reweight grouped 2x2 conv (384,6,2,2) fused to one (4*128, 384) matrix,
    # rows ordered s-major to match the kernel's dflat layout.
    in_pg_r = MID_CH // GROUPS             # 6
    out_pg_r = NUM_FEATURES // GROUPS      # 24
    wr_fused = jnp.zeros((NPOOL * MID_PAD, NUM_FEATURES), jnp.float32)
    for g in range(GROUPS):
        blk = wr[g * out_pg_r:(g + 1) * out_pg_r]          # (24, 6, 2, 2)
        for kh in range(FINAL_W):
            for kw in range(FINAL_W):
                s = kh * FINAL_W + kw
                r0 = s * MID_PAD + g * in_pg_r
                wr_fused = wr_fused.at[
                    r0:r0 + in_pg_r,
                    g * out_pg_r:(g + 1) * out_pg_r].set(blk[:, :, kh, kw].T)

    b1_row = b1.reshape(1, NUM_FEATURES)
    bd_row = jnp.pad(bd, (0, MID_PAD - MID_CH)).reshape(1, MID_PAD)
    br_row = br.reshape(1, NUM_FEATURES)

    def weight_spec(shape):
        # Same block every grid step -> DMA'd once, stays resident in VMEM.
        return pl.BlockSpec(shape, lambda i, n=len(shape): (0,) * n)

    rows_per_block = bt * NPOOL * POOL_ROWS                # bt * 160

    out = pl.pallas_call(
        glyph_group_cnn_kernel,
        out_shape=jax.ShapeDtypeStruct((bp, NUM_FEATURES), jnp.float32),
        grid=(nb,),
        in_specs=[
            pl.BlockSpec((rows_per_block, K_PAD), lambda i: (i, 0)),
            weight_spec((K_PAD, NUM_FEATURES)),
            weight_spec((1, NUM_FEATURES)),
            weight_spec((NUM_FEATURES, MID_PAD)),
            weight_spec((1, MID_PAD)),
            weight_spec((NPOOL * MID_PAD, NUM_FEATURES)),
            weight_spec((1, NUM_FEATURES)),
        ],
        out_specs=pl.BlockSpec((bt, NUM_FEATURES), lambda i: (i, 0)),
        scratch_shapes=[pltpu.VMEM((bt, NPOOL * MID_PAD), jnp.float32)],
        compiler_params=pltpu.CompilerParams(
            dimension_semantics=("parallel",)),
    )(patches, w1_mat, b1_row, wd_dense, bd_row, wr_fused, br_row)

    # Dropout (cnn_drop=0.5) is identity in eval mode.
    return out[:b]


def reference_forward(x, w1, b1, wd, bd, wr, br):
    """Pure-JAX reference mirroring the PyTorch forward exactly (NCHW)."""
    dn = ('NCHW', 'OIHW', 'NCHW')
    h = lax.conv_general_dilated(x, w1, (1, 1), 'VALID', dimension_numbers=dn)
    h = jnp.maximum(h + b1.reshape(1, -1, 1, 1), 0.0)          # (B,384,12,12)
    h = h.reshape(x.shape[0], NUM_FEATURES, FINAL_W, POOL_H,
                  FINAL_W, POOL_W).max(axis=(3, 5))            # (B,384,2,2)
    d = lax.conv_general_dilated(h, wd, (1, 1), 'VALID',
                                 dimension_numbers=dn,
                                 feature_group_count=MID_GROUPS)
    d = d + bd.reshape(1, -1, 1, 1)                            # (B,96,2,2)
    o = lax.conv_general_dilated(d, wr, (1, 1), 'VALID',
                                 dimension_numbers=dn,
                                 feature_group_count=GROUPS)
    o = jnp.maximum(o + br.reshape(1, -1, 1, 1), 0.0)          # (B,384,1,1)
    return o.reshape(x.shape[0], -1)


if __name__ == "__main__":
    key = jax.random.PRNGKey(0)
    k1, k2, k3, k4, k5, k6, kx = jax.random.split(key, 7)
    initrange = 0.1
    # Conv2d weights ~ U(-0.1, 0.1), biases zero (matches init_weights()).
    w1 = jax.random.uniform(k1, (NUM_FEATURES, FONT_CHANNELS,
                                 KERNEL_SIZE, KERNEL_SIZE),
                            jnp.float32, -initrange, initrange)
    wd = jax.random.uniform(k2, (MID_CH, NUM_FEATURES // MID_GROUPS, 1, 1),
                            jnp.float32, -initrange, initrange)
    wr = jax.random.uniform(k3, (NUM_FEATURES, MID_CH // GROUPS,
                                 FINAL_W, FINAL_W),
                            jnp.float32, -initrange, initrange)
    b1 = jnp.zeros((NUM_FEATURES,), jnp.float32)
    bd = jnp.zeros((MID_CH,), jnp.float32)
    br = jnp.zeros((NUM_FEATURES,), jnp.float32)

    x = jax.random.normal(kx, (B, FONT_CHANNELS, H, W), jnp.float32)

    # 1) init_weights() configuration (zero biases)
    out = jax.block_until_ready(glyph_group_cnn(x, w1, b1, wd, bd, wr, br))
    ref = jax.block_until_ready(reference_forward(x, w1, b1, wd, bd, wr, br))
    assert out.shape == (B, NUM_FEATURES), out.shape
    assert jnp.allclose(out, ref, atol=2e-4, rtol=2e-4), \
        float(jnp.max(jnp.abs(out - ref)))

    # 2) non-zero biases (exercises the bias paths and the duplicate-row pool pad)
    b1n = jax.random.uniform(k4, (NUM_FEATURES,), jnp.float32, -0.1, 0.1)
    bdn = jax.random.uniform(k5, (MID_CH,), jnp.float32, -0.1, 0.1)
    brn = jax.random.uniform(k6, (NUM_FEATURES,), jnp.float32, -0.1, 0.1)
    out2 = jax.block_until_ready(glyph_group_cnn(x, w1, b1n, wd, bdn, wr, brn))
    ref2 = jax.block_until_ready(reference_forward(x, w1, b1n, wd, bdn, wr, brn))
    assert jnp.allclose(out2, ref2, atol=2e-4, rtol=2e-4), \
        float(jnp.max(jnp.abs(out2 - ref2)))

    print("KERNEL_OK")
</pallas_src>

<mosaic_0001>
module attributes {stable_mosaic.version = 11 : i64} {
  func.func @glyph_group_cnn_kernel(%arg0: i32, %arg1: memref<320x32xf32, #tpu.memory_space<vmem>>, %arg2: memref<32x384xf32, #tpu.memory_space<vmem>>, %arg3: memref<1x384xf32, #tpu.memory_space<vmem>>, %arg4: memref<384x128xf32, #tpu.memory_space<vmem>>, %arg5: memref<1x128xf32, #tpu.memory_space<vmem>>, %arg6: memref<512x384xf32, #tpu.memory_space<vmem>>, %arg7: memref<1x384xf32, #tpu.memory_space<vmem>>, %arg8: memref<2x384xf32, #tpu.memory_space<vmem>>, %arg9: memref<2x512xf32, #tpu.memory_space<vmem>>) attributes {dimension_semantics = [#tpu.dimension_semantics<parallel>], iteration_bounds = array<i64: 1>, scalar_prefetch = 0 : i64, scratch_operands = 1 : i64, tpu.core_type = #tpu.core_type<tc>, window_params = [{transform_indices = @transform_0, window_bounds = array<i64: 320, 32>}, {pipeline_mode = #tpu.pipeline_mode<synchronous>, transform_indices = @transform_1, window_bounds = array<i64: 32, 384>}, {pipeline_mode = #tpu.pipeline_mode<synchronous>, transform_indices = @transform_2, window_bounds = array<i64: 1, 384>}, {pipeline_mode = #tpu.pipeline_mode<synchronous>, transform_indices = @transform_3, window_bounds = array<i64: 384, 128>}, {pipeline_mode = #tpu.pipeline_mode<synchronous>, transform_indices = @transform_4, window_bounds = array<i64: 1, 128>}, {pipeline_mode = #tpu.pipeline_mode<synchronous>, transform_indices = @transform_5, window_bounds = array<i64: 512, 384>}, {pipeline_mode = #tpu.pipeline_mode<synchronous>, transform_indices = @transform_6, window_bounds = array<i64: 1, 384>}, {transform_indices = @transform_7, window_bounds = array<i64: 2, 384>}]} {
    %c0 = arith.constant 0 : index
    %c0_0 = arith.constant 0 : index
    %0 = vector.load %arg1[%c0, %c0_0] : memref<320x32xf32, #tpu.memory_space<vmem>>, vector<320x32xf32>
    %c0_1 = arith.constant 0 : index
    %c0_2 = arith.constant 0 : index
    %1 = vector.load %arg2[%c0_1, %c0_2] : memref<32x384xf32, #tpu.memory_space<vmem>>, vector<32x384xf32>
    %cst = arith.constant dense<0.000000e+00> : vector<320x384xf32>
    %2 = tpu.matmul %0, %1, %cst {dimension_numbers = #tpu.dot_dimension_numbers<[1], [0], [0], [1], [0, 0, 1, 1], [], []>} : vector<320x32xf32>, vector<32x384xf32>, vector<320x384xf32> -> vector<320x384xf32>
    %c0_3 = arith.constant 0 : index
    %c0_4 = arith.constant 0 : index
    %3 = vector.load %arg3[%c0_3, %c0_4] : memref<1x384xf32, #tpu.memory_space<vmem>>, vector<1x384xf32>
    %4 = vector.broadcast %3 : vector<1x384xf32> to vector<320x384xf32>
    %5 = arith.addf %2, %4 : vector<320x384xf32>
    %cst_5 = arith.constant 0.000000e+00 : f32
    %6 = vector.broadcast %cst_5 : f32 to vector<320x384xf32>
    %7 = arith.maximumf %5, %6 : vector<320x384xf32>
    %8 = vector.shape_cast %7 : vector<320x384xf32> to vector<8x40x384xf32>
    %cst_6 = arith.constant dense<0xFF800000> : vector<8x384xf32>
    %9 = vector.multi_reduction <maximumf>, %8, %cst_6 [1] : vector<8x40x384xf32> to vector<8x384xf32>
    %c0_7 = arith.constant 0 : index
    %c0_8 = arith.constant 0 : index
    %10 = vector.load %arg4[%c0_7, %c0_8] : memref<384x128xf32, #tpu.memory_space<vmem>>, vector<384x128xf32>
    %cst_9 = arith.constant dense<0.000000e+00> : vector<8x128xf32>
    %11 = tpu.matmul %9, %10, %cst_9 {dimension_numbers = #tpu.dot_dimension_numbers<[1], [0], [0], [1], [0, 0, 1, 1], [], []>} : vector<8x384xf32>, vector<384x128xf32>, vector<8x128xf32> -> vector<8x128xf32>
    %c0_10 = arith.constant 0 : index
    %c0_11 = arith.constant 0 : index
    %12 = vector.load %arg5[%c0_10, %c0_11] : memref<1x128xf32, #tpu.memory_space<vmem>>, vector<1x128xf32>
    %13 = vector.broadcast %12 : vector<1x128xf32> to vector<8x128xf32>
    %14 = arith.addf %11, %13 : vector<8x128xf32>
    %15 = vector.extract_strided_slice %14 {offsets = [0, 0], sizes = [2, 128], strides = [1, 1]} : vector<8x128xf32> to vector<2x128xf32>
    %c0_12 = arith.constant 0 : index
    %c0_13 = arith.constant 0 : index
    %16 = vector.load %arg9[%c0_12, %c0_13] : memref<2x512xf32, #tpu.memory_space<vmem>>, vector<2x128xf32>
    tpu.vector_store %arg9[%c0_12, %c0_13], %15 {strides = array<i32>} : memref<2x512xf32, #tpu.memory_space<vmem>>, vector<2x128xf32>,
    %17 = vector.extract_strided_slice %14 {offsets = [2, 0], sizes = [2, 128], strides = [1, 1]} : vector<8x128xf32> to vector<2x128xf32>
    %c0_14 = arith.constant 0 : index
    %c128 = arith.constant 128 : index
    %18 = vector.load %arg9[%c0_14, %c128] : memref<2x512xf32, #tpu.memory_space<vmem>>, vector<2x128xf32>
    tpu.vector_store %arg9[%c0_14, %c128], %17 {strides = array<i32>} : memref<2x512xf32, #tpu.memory_space<vmem>>, vector<2x128xf32>,
    %19 = vector.extract_strided_slice %14 {offsets = [4, 0], sizes = [2, 128], strides = [1, 1]} : vector<8x128xf32> to vector<2x128xf32>
    %c0_15 = arith.constant 0 : index
    %c256 = arith.constant 256 : index
    %20 = vector.load %arg9[%c0_15, %c256] : memref<2x512xf32, #tpu.memory_space<vmem>>, vector<2x128xf32>
    tpu.vector_store %arg9[%c0_15, %c256], %19 {strides = array<i32>} : memref<2x512xf32, #tpu.memory_space<vmem>>, vector<2x128xf32>,
    %21 = vector.extract_strided_slice %14 {offsets = [6, 0], sizes = [2, 128], strides = [1, 1]} : vector<8x128xf32> to vector<2x128xf32>
    %c0_16 = arith.constant 0 : index
    %c384 = arith.constant 384 : index
    %22 = vector.load %arg9[%c0_16, %c384] : memref<2x512xf32, #tpu.memory_space<vmem>>, vector<2x128xf32>
    tpu.vector_store %arg9[%c0_16, %c384], %21 {strides = array<i32>} : memref<2x512xf32, #tpu.memory_space<vmem>>, vector<2x128xf32>,
    %c0_17 = arith.constant 0 : index
    %c0_18 = arith.constant 0 : index
    %23 = vector.load %arg9[%c0_17, %c0_18] : memref<2x512xf32, #tpu.memory_space<vmem>>, vector<2x512xf32>
    %c0_19 = arith.constant 0 : index
    %c0_20 = arith.constant 0 : index
    %24 = vector.load %arg6[%c0_19, %c0_20] : memref<512x384xf32, #tpu.memory_space<vmem>>, vector<512x384xf32>
    %cst_21 = arith.constant dense<0.000000e+00> : vector<2x384xf32>
    %25 = tpu.matmul %23, %24, %cst_21 {dimension_numbers = #tpu.dot_dimension_numbers<[1], [0], [0], [1], [0, 0, 1, 1], [], []>} : vector<2x512xf32>, vector<512x384xf32>, vector<2x384xf32> -> vector<2x384xf32>
    %c0_22 = arith.constant 0 : index
    %c0_23 = arith.constant 0 : index
    %26 = vector.load %arg7[%c0_22, %c0_23] : memref<1x384xf32, #tpu.memory_space<vmem>>, vector<1x384xf32>
    %27 = vector.broadcast %26 : vector<1x384xf32> to vector<2x384xf32>
    %28 = arith.addf %25, %27 : vector<2x384xf32>
    %cst_24 = arith.constant 0.000000e+00 : f32
    %29 = vector.broadcast %cst_24 : f32 to vector<2x384xf32>
    %30 = arith.maximumf %28, %29 : vector<2x384xf32>
    %c0_25 = arith.constant 0 : index
    %c0_26 = arith.constant 0 : index
    %31 = vector.load %arg8[%c0_25, %c0_26] : memref<2x384xf32, #tpu.memory_space<vmem>>, vector<2x384xf32>
    tpu.vector_store %arg8[%c0_25, %c0_26], %30 {strides = array<i32>} : memref<2x384xf32, #tpu.memory_space<vmem>>, vector<2x384xf32>,
    return
  }
  func.func @transform_0(%arg0: i32) -> (i32, i32) {
    %c0_i32 = arith.constant 0 : i32
    %c0_i32_0 = arith.constant 0 : i32
    return %arg0, %c0_i32 : i32, i32
  }
  func.func @transform_1(%arg0: i32) -> (i32, i32) {
    %c0_i32 = arith.constant 0 : i32
    %c0_i32_0 = arith.constant 0 : i32
    %c0_i32_1 = arith.constant 0 : i32
    return %c0_i32, %c0_i32_0 : i32, i32
  }
  func.func @transform_2(%arg0: i32) -> (i32, i32) {
    %c0_i32 = arith.constant 0 : i32
    %c0_i32_0 = arith.constant 0 : i32
    %c0_i32_1 = arith.constant 0 : i32
    return %c0_i32, %c0_i32_0 : i32, i32
  }
  func.func @transform_3(%arg0: i32) -> (i32, i32) {
    %c0_i32 = arith.constant 0 : i32
    %c0_i32_0 = arith.constant 0 : i32
    %c0_i32_1 = arith.constant 0 : i32
    return %c0_i32, %c0_i32_0 : i32, i32
  }
  func.func @transform_4(%arg0: i32) -> (i32, i32) {
    %c0_i32 = arith.constant 0 : i32
    %c0_i32_0 = arith.constant 0 : i32
    %c0_i32_1 = arith.constant 0 : i32
    return %c0_i32, %c0_i32_0 : i32, i32
  }
  func.func @transform_5(%arg0: i32) -> (i32, i32) {
    %c0_i32 = arith.constant 0 : i32
    %c0_i32_0 = arith.constant 0 : i32
    %c0_i32_1 = arith.constant 0 : i32
    return %c0_i32, %c0_i32_0 : i32, i32
  }
  func.func @transform_6(%arg0: i32) -> (i32, i32) {
    %c0_i32 = arith.constant 0 : i32
    %c0_i32_0 = arith.constant 0 : i32
    %c0_i32_1 = arith.constant 0 : i32
    return %c0_i32, %c0_i32_0 : i32, i32
  }
  func.func @transform_7(%arg0: i32) -> (i32, i32) {
    %c0_i32 = arith.constant 0 : i32
    %c0_i32_0 = arith.constant 0 : i32
    return %arg0, %c0_i32 : i32, i32
  }
}

</mosaic_0001>

<llo_original>
// kernel: tpu_custom_call.1
$region0: #{tpu_custom_call.1}
  #allocation0 [shape = 'u32[]', space=smem, size = 0x4, offset = 0x4, fixed_abs, tag = 'smem constant byte address 0x4 - core index']
  #allocation1 [shape = 'u32[144,128]{1,0:T(1,128)}', space=vmem, size = 0x12000, scoped, tag = 'internal scratch']
  #allocation2 [shape = 'f32[2,512]{1,0:T(2,128)}', space=vmem, size = 0x1000, scoped, tag = 'scratch operand']
  %s0 = inlined_call_operand.vmem [shape: f32[320,32], index: 0, kind: input, shape index: {}]
  %s1 = inlined_call_operand.hbm [shape: f32[32,384], index: 1, kind: input, shape index: {}]
  %s2 = inlined_call_operand.vmem [shape: f32[1,384], index: 2, kind: input, shape index: {}]
  %s3 = inlined_call_operand.vmem [shape: f32[384,128], index: 3, kind: input, shape index: {}]
  %s4 = inlined_call_operand.vmem [shape: f32[1,128], index: 4, kind: input, shape index: {}]
  %s5 = inlined_call_operand.hbm [shape: f32[512,384], index: 5, kind: input, shape index: {}]
  %s6 = inlined_call_operand.vmem [shape: f32[1,384], index: 6, kind: input, shape index: {}]
  %s7 = inlined_call_operand.hbm [shape: f32[2,384], index: 7, kind: output, shape index: {}]
  %s8 = sld [smem:[#allocation0]]
  $region46: #{tpu_custom_call.1} parent=0
    _
  %s10 = ssub.s32 1, %s8
  %s11 = scalar_select 0, %s10, %s8
  $region1: #{tpu_custom_call.1} parent=0
    #allocation3 [shape = 'u8[49152]{0}', space=vmem, size = 0xc000, scoped, tag = 'input window, operand 1, single buffered']
    #allocation4 [shape = 's32[1]{0}', space=sflag, size = 0x4, scoped, tag = 'scoped memory for tpu_custom_call.1']
    #allocation5 [shape = 's32[1]{0}', space=sflag, size = 0x4, scoped, tag = 'scoped memory for tpu_custom_call.1']
    #allocation6 [shape = 'u8[786432]{0}', space=vmem, size = 0xc0000, scoped, tag = 'input window, operand 5, single buffered']
    #allocation7 [shape = 's32[1]{0}', space=sflag, size = 0x4, scoped, tag = 'scoped memory for tpu_custom_call.1']
    #allocation8 [shape = 'u8[3072]{0}', space=vmem, size = 0xc00, scoped, tag = 'output window, operand 0, single buffered']
    %12 = vsyncpa [#allocation4], 0
    %13 = vsyncpa [#allocation7], 0
    %14 = vsyncpa [#allocation5], 0
    // Predicated region
    $region2: #{tpu_custom_call.1} parent=1 // pred_check
      _
    $region3: #{tpu_custom_call.1} parent=1 // pred_check_branch
      %16 = sbr.rel (0) target = $region5
    $region4: #{tpu_custom_call.1} parent=1 // pred_region
      _
    $region5: #{tpu_custom_call.1} parent=1 // pred_fallthru
      _
    // Predicated region
    $region6: #{tpu_custom_call.1} parent=1 // pred_check
      _
    $region7: #{tpu_custom_call.1} parent=1 // pred_check_branch
      %18 = sbr.rel (0) target = $region9
    $region8: #{tpu_custom_call.1} parent=1 // pred_region
      %s20 = ssub.s32 1536, 1536
      %21 = vsyncadd [#allocation4], %s20
      %s22 = sshll.u32 [#allocation3], 4
      %s23 = int_to_ptr.vmem [resolvable:$true] %s22
      %28 = dma.hbm_to_vmem [thread:$0]  %s1, 1536, %s23, [#allocation4], 384, 384, 24
    $region9: #{tpu_custom_call.1} parent=1 // pred_fallthru
      _
    // Predicated region
    $region10: #{tpu_custom_call.1} parent=1 // pred_check
      _
    $region11: #{tpu_custom_call.1} parent=1 // pred_check_branch
      %30 = sbr.rel (0) target = $region13
    $region12: #{tpu_custom_call.1} parent=1 // pred_region
      _
    $region13: #{tpu_custom_call.1} parent=1 // pred_fallthru
      _
    // Predicated region
    $region14: #{tpu_custom_call.1} parent=1 // pred_check
      _
    $region15: #{tpu_custom_call.1} parent=1 // pred_check_branch
      %32 = sbr.rel (0) target = $region17
    $region16: #{tpu_custom_call.1} parent=1 // pred_region
      _
    $region17: #{tpu_custom_call.1} parent=1 // pred_fallthru
      _
    // Predicated region
    $region18: #{tpu_custom_call.1} parent=1 // pred_check
      _
    $region19: #{tpu_custom_call.1} parent=1 // pred_check_branch
      %34 = sbr.rel (0) target = $region21
    $region20: #{tpu_custom_call.1} parent=1 // pred_region
      _
    $region21: #{tpu_custom_call.1} parent=1 // pred_fallthru
      _
    // Predicated region
    $region22: #{tpu_custom_call.1} parent=1 // pred_check
      _
    $region23: #{tpu_custom_call.1} parent=1 // pred_check_branch
      %36 = sbr.rel (0) target = $region25
    $region24: #{tpu_custom_call.1} parent=1 // pred_region
      %s38 = ssub.s32 24576, 24576
      %39 = vsyncadd [#allocation7], %s38
      %s40 = sshll.u32 [#allocation6], 4
      %s41 = int_to_ptr.vmem [resolvable:$true] %s40
      %46 = dma.hbm_to_vmem [thread:$0]  %s5, 24576, %s41, [#allocation7], 384, 384, 24
    $region25: #{tpu_custom_call.1} parent=1 // pred_fallthru
      _
    // Predicated region
    $region26: #{tpu_custom_call.1} parent=1 // pred_check
      _
    $region27: #{tpu_custom_call.1} parent=1 // pred_check_branch
      %48 = sbr.rel (0) target = $region29
    $region28: #{tpu_custom_call.1} parent=1 // pred_region
      _
    $region29: #{tpu_custom_call.1} parent=1 // pred_fallthru
      _
    // Predicated region
    $region30: #{tpu_custom_call.1} parent=1 // pred_check
      _
    $region31: #{tpu_custom_call.1} parent=1 // pred_check_branch
      %50 = sbr.rel (0) target = $region33
    $region32: #{tpu_custom_call.1} parent=1 // pred_region
      %51 = dma.done [#allocation4], 1536
    $region33: #{tpu_custom_call.1} parent=1 // pred_fallthru
      _
    // Predicated region
    $region34: #{tpu_custom_call.1} parent=1 // pred_check
      _
    $region35: #{tpu_custom_call.1} parent=1 // pred_check_branch
      %53 = sbr.rel (0) target = $region37
    $region36: #{tpu_custom_call.1} parent=1 // pred_region
      %54 = dma.done [#allocation7], 24576
    $region37: #{tpu_custom_call.1} parent=1 // pred_fallthru
      _
    %v55 = vld [vmem:[%s0] sm:$0xff]
    %v56 = vld [vmem:[%s0 + $0x8] sm:$0xff]
    %v57 = vld [vmem:[%s0 + $0x10] sm:$0xff]
    %v58 = vld [vmem:[%s0 + $0x18] sm:$0xff]
    %v59 = vld [vmem:[%s0 + $0x20] sm:$0xff]
    %v60 = vld [vmem:[%s0 + $0x28] sm:$0xff]
    %v61 = vld [vmem:[%s0 + $0x30] sm:$0xff]
    %v62 = vld [vmem:[%s0 + $0x38] sm:$0xff]
    %v63 = vld [vmem:[%s0 + $0x40] sm:$0xff]
    %v64 = vld [vmem:[%s0 + $0x48] sm:$0xff]
    %v65 = vld [vmem:[%s0 + $0x50] sm:$0xff]
    %v66 = vld [vmem:[%s0 + $0x58] sm:$0xff]
    %v67 = vld [vmem:[%s0 + $0x60] sm:$0xff]
    %v68 = vld [vmem:[%s0 + $0x68] sm:$0xff]
    %v69 = vld [vmem:[%s0 + $0x70] sm:$0xff]
    %v70 = vld [vmem:[%s0 + $0x78] sm:$0xff]
    %v71 = vld [vmem:[%s0 + $0x80] sm:$0xff]
    %v72 = vld [vmem:[%s0 + $0x88] sm:$0xff]
    %v73 = vld [vmem:[%s0 + $0x90] sm:$0xff]
    %v74 = vld [vmem:[%s0 + $0x98] sm:$0xff]
    %v75 = vld [vmem:[%s0 + $0xa0] sm:$0xff]
    %v76 = vld [vmem:[%s0 + $0xa8] sm:$0xff]
    %v77 = vld [vmem:[%s0 + $0xb0] sm:$0xff]
    %v78 = vld [vmem:[%s0 + $0xb8] sm:$0xff]
    %v79 = vld [vmem:[%s0 + $0xc0] sm:$0xff]
    %v80 = vld [vmem:[%s0 + $0xc8] sm:$0xff]
    %v81 = vld [vmem:[%s0 + $0xd0] sm:$0xff]
    %v82 = vld [vmem:[%s0 + $0xd8] sm:$0xff]
    %v83 = vld [vmem:[%s0 + $0xe0] sm:$0xff]
    %v84 = vld [vmem:[%s0 + $0xe8] sm:$0xff]
    %v85 = vld [vmem:[%s0 + $0xf0] sm:$0xff]
    %v86 = vld [vmem:[%s0 + $0xf8] sm:$0xff]
    %v87 = vld [vmem:[%s0 + $0x100] sm:$0xff]
    %v88 = vld [vmem:[%s0 + $0x108] sm:$0xff]
    %v89 = vld [vmem:[%s0 + $0x110] sm:$0xff]
    %v90 = vld [vmem:[%s0 + $0x118] sm:$0xff]
    %v91 = vld [vmem:[%s0 + $0x120] sm:$0xff]
    %v92 = vld [vmem:[%s0 + $0x128] sm:$0xff]
    %v93 = vld [vmem:[%s0 + $0x130] sm:$0xff]
    %v94 = vld [vmem:[%s0 + $0x138] sm:$0xff]
    %v95 = vld [vmem:[#allocation3] sm:$0xff]
    %v96 = vld [vmem:[#allocation3 + $0x8] sm:$0xff]
    %v97 = vld [vmem:[#allocation3 + $0x10] sm:$0xff]
    %v98 = vld [vmem:[#allocation3 + $0x18] sm:$0xff]
    %v99 = vld [vmem:[#allocation3 + $0x20] sm:$0xff]
    %v100 = vld [vmem:[#allocation3 + $0x28] sm:$0xff]
    %v101 = vld [vmem:[#allocation3 + $0x30] sm:$0xff]
    %v102 = vld [vmem:[#allocation3 + $0x38] sm:$0xff]
    %v103 = vld [vmem:[#allocation3 + $0x40] sm:$0xff]
    %v104 = vld [vmem:[#allocation3 + $0x48] sm:$0xff]
    %v105 = vld [vmem:[#allocation3 + $0x50] sm:$0xff]
    %v106 = vld [vmem:[#allocation3 + $0x58] sm:$0xff]
    %v107 = vld [vmem:[%s2] sm:$0x7]
    %v109 = vlaneseq
    %v110 = vshrl.u32 %v109, 7
    %v111 = vsub.s32 0, %v110
    %v112 = vrot.slane %v107, %v111
    %v113 = vlaneseq
    %v114 = vshrl.u32 %v113, 7
    %v115 = vsub.s32 1, %v114
    %v116 = vrot.slane %v107, %v115
    %v117 = vlaneseq
    %v118 = vshrl.u32 %v117, 7
    %v119 = vsub.s32 2, %v118
    %v120 = vrot.slane %v107, %v119
    %vm124 = vcmask 261120
    %v126 = vsel %vm124, %v55, 0
    %v129 = vsel %vm124, %v56, 0
    %v132 = vsel %vm124, %v57, 0
    %v135 = vsel %vm124, %v58, 0
    %v138 = vsel %vm124, %v59, 0
    %v141 = vsel %vm124, %v60, 0
    %v144 = vsel %vm124, %v61, 0
    %v147 = vsel %vm124, %v62, 0
    %v150 = vsel %vm124, %v63, 0
    %v153 = vsel %vm124, %v64, 0
    %v156 = vsel %vm124, %v65, 0
    %v159 = vsel %vm124, %v66, 0
    %v162 = vsel %vm124, %v67, 0
    %v165 = vsel %vm124, %v68, 0
    %v168 = vsel %vm124, %v69, 0
    %v171 = vsel %vm124, %v70, 0
    %v174 = vsel %vm124, %v71, 0
    %v177 = vsel %vm124, %v72, 0
    %v180 = vsel %vm124, %v73, 0
    %v183 = vsel %vm124, %v74, 0
    %v186 = vsel %vm124, %v75, 0
    %v189 = vsel %vm124, %v76, 0
    %v192 = vsel %vm124, %v77, 0
    %v195 = vsel %vm124, %v78, 0
    %v198 = vsel %vm124, %v79, 0
    %v201 = vsel %vm124, %v80, 0
    %v204 = vsel %vm124, %v81, 0
    %v207 = vsel %vm124, %v82, 0
    %v210 = vsel %vm124, %v83, 0
    %v213 = vsel %vm124, %v84, 0
    %v216 = vsel %vm124, %v85, 0
    %v219 = vsel %vm124, %v86, 0
    %v222 = vsel %vm124, %v87, 0
    %v225 = vsel %vm124, %v88, 0
    %v228 = vsel %vm124, %v89, 0
    %v231 = vsel %vm124, %v90, 0
    %v234 = vsel %vm124, %v91, 0
    %v237 = vsel %vm124, %v92, 0
    %v240 = vsel %vm124, %v93, 0
    %v243 = vsel %vm124, %v94, 0
    %245 = vmatprep.subr.mxu0 %v96
    %246 = vmatpush1.msra.mxu0 %v95
    %247 = vmatprep.subr.mxu0 %v99
    %248 = vmatpush1.msra.mxu0 %v98
    %249 = vmatprep.subr.mxu0 %v102
    %250 = vmatpush1.msra.mxu0 %v101
    %251 = vmatprep.subr.mxu0 %v105
    %252 = vmatpush1.msra.mxu0 %v104
    %253 = vmatprep.subr.mxu0 0.0
    %254 = vmatpush1.msra.mxu0 0.0
    %255 = vmatprep.subr.mxu0 0.0
    %256 = vmatpush1.msra.mxu0 0.0
    %257 = vmatprep.subr.mxu0 0.0
    %258 = vmatpush1.msra.mxu0 0.0
    %259 = vmatprep.subr.mxu0 0.0
    %260 = vmatpush1.msra.mxu0 0.0
    %261 = vmatprep.subr.mxu0 0.0
    %262 = vmatpush1.msra.mxu0 0.0
    %263 = vmatprep.subr.mxu0 0.0
    %264 = vmatpush1.msra.mxu0 0.0
    %265 = vmatprep.subr.mxu0 0.0
    %266 = vmatpush1.msra.mxu0 0.0
    %267 = vmatprep.subr.mxu0 0.0
    %268 = vmatpush1.msra.mxu0 0.0
    %269 = vmatprep.subr.mxu0 0.0
    %270 = vmatpush1.msra.mxu0 0.0
    %271 = vmatprep.subr.mxu0 0.0
    %272 = vmatpush1.msra.mxu0 0.0
    %273 = vmatprep.subr.mxu0 0.0
    %274 = vmatpush1.msra.mxu0 0.0
    %275 = vmatprep.subr.mxu0 0.0
    %276 = vmatpush1.msra.mxu0 0.0
    %277 = vmatprep.subr.mxu0 0.0
    %278 = vmatpush1.msra.mxu0 0.0
    %279 = vmatprep.subr.mxu0 0.0
    %280 = vmatpush1.msra.mxu0 0.0
    %281 = vmatprep.subr.mxu0 0.0
    %282 = vmatpush1.msra.mxu0 0.0
    %283 = vmatprep.subr.mxu0 0.0
    %284 = vmatpush1.msra.mxu0 0.0
    %285 = vmatprep.subr.mxu0 0.0
    %286 = vmatpush1.msra.mxu0 0.0
    %287 = vmatprep.subr.mxu0 0.0
    %288 = vmatpush1.msra.mxu0 0.0
    %289 = vmatprep.subr.mxu0 0.0
    %290 = vmatpush1.msra.mxu0 0.0
    %291 = vmatprep.subr.mxu0 0.0
    %292 = vmatpush1.msra.mxu0 0.0
    %293 = vmatprep.subr.mxu0 0.0
    %294 = vmatpush1.msra.mxu0 0.0
    %295 = vmatprep.subr.mxu0 0.0
    %296 = vmatpush1.msra.mxu0 0.0
    %297 = vmatprep.subr.mxu0 0.0
    %298 = vmatpush1.msra.mxu0 0.0
    %299 = vmatprep.subr.mxu0 0.0
    %300 = vmatpush1.msra.mxu0 0.0
    %301 = vmatprep.subr.mxu0 0.0
    %302 = vmatpush1.msra.mxu0 0.0
    %303 = vmatprep.subr.mxu0 0.0
    %304 = vmatpush1.msra.mxu0 0.0
    %305 = vmatprep.subr.mxu0 0.0
    %306 = vmatpush1.msra.mxu0 0.0
    %307 = vmatprep.subr.mxu0 0.0
    %308 = vmatpush1.msra.mxu0 0.0
    %309 = vmatprep.mubr.f32.mxu0 0.0
    %310 = vmatmul.mubr.f32.gmra.mrb[0].mxu0 %v126
    %v311 = vpop.f32.mrb[0].mxu0
    %v312 = vadd.f32 %v112, %v311
    %v313 = vpop.f32.mrb[0].mxu0
    %v314 = vadd.f32 %v116, %v313
    %315 = vmatprep.mubr.f32.mxu0 0.0
    %316 = vmatmul.mubr.f32.gmra.mrb[0].mxu0 %v129
    %v317 = vpop.f32.mrb[0].mxu0
    %v318 = vadd.f32 %v112, %v317
    %v319 = vpop.f32.mrb[0].mxu0
    %v320 = vadd.f32 %v116, %v319
    %321 = vmatprep.mubr.f32.mxu0 0.0
    %322 = vmatmul.mubr.f32.gmra.mrb[0].mxu0 %v132
    %v323 = vpop.f32.mrb[0].mxu0
    %v324 = vadd.f32 %v112, %v323
    %v325 = vpop.f32.mrb[0].mxu0
    %v326 = vadd.f32 %v116, %v325
    %327 = vmatprep.mubr.f32.mxu0 0.0
    %328 = vmatmul.mubr.f32.gmra.mrb[0].mxu0 %v135
    %v329 = vpop.f32.mrb[0].mxu0
    %v330 = vadd.f32 %v112, %v329
    %v331 = vpop.f32.mrb[0].mxu0
    %v332 = vadd.f32 %v116, %v331
    %333 = vmatprep.mubr.f32.mxu0 0.0
    %334 = vmatmul.mubr.f32.gmra.mrb[0].mxu0 %v138
    %v335 = vpop.f32.mrb[0].mxu0
    %v336 = vadd.f32 %v112, %v335
    %v337 = vpop.f32.mrb[0].mxu0
    %v338 = vadd.f32 %v116, %v337
    %339 = vmatprep.mubr.f32.mxu0 0.0
    %340 = vmatmul.mubr.f32.gmra.mrb[0].mxu0 %v141
    %v341 = vpop.f32.mrb[0].mxu0
    %v342 = vadd.f32 %v112, %v341
    %v343 = vpop.f32.mrb[0].mxu0
    %v344 = vadd.f32 %v116, %v343
    %345 = vmatprep.mubr.f32.mxu0 0.0
    %346 = vmatmul.mubr.f32.gmra.mrb[0].mxu0 %v144
    %v347 = vpop.f32.mrb[0].mxu0
    %v348 = vadd.f32 %v112, %v347
    %v349 = vpop.f32.mrb[0].mxu0
    %v350 = vadd.f32 %v116, %v349
    %351 = vmatprep.mubr.f32.mxu0 0.0
    %352 = vmatmul.mubr.f32.gmra.mrb[0].mxu0 %v147
    %v353 = vpop.f32.mrb[0].mxu0
    %v354 = vadd.f32 %v112, %v353
    %v355 = vpop.f32.mrb[0].mxu0
    %v356 = vadd.f32 %v116, %v355
    %357 = vmatprep.mubr.f32.mxu0 0.0
    %358 = vmatmul.mubr.f32.gmra.mrb[0].mxu0 %v150
    %v359 = vpop.f32.mrb[0].mxu0
    %v360 = vadd.f32 %v112, %v359
    %v361 = vpop.f32.mrb[0].mxu0
    %v362 = vadd.f32 %v116, %v361
    %363 = vmatprep.mubr.f32.mxu0 0.0
    %364 = vmatmul.mubr.f32.gmra.mrb[0].mxu0 %v153
    %v365 = vpop.f32.mrb[0].mxu0
    %v366 = vadd.f32 %v112, %v365
    %v367 = vpop.f32.mrb[0].mxu0
    %v368 = vadd.f32 %v116, %v367
    %369 = vmatprep.mubr.f32.mxu0 0.0
    %370 = vmatmul.mubr.f32.gmra.mrb[0].mxu0 %v156
    %v371 = vpop.f32.mrb[0].mxu0
    %v372 = vadd.f32 %v112, %v371
    %v373 = vpop.f32.mrb[0].mxu0
    %v374 = vadd.f32 %v116, %v373
    %375 = vmatprep.mubr.f32.mxu0 0.0
    %376 = vmatmul.mubr.f32.gmra.mrb[0].mxu0 %v159
    %v377 = vpop.f32.mrb[0].mxu0
    %v378 = vadd.f32 %v112, %v377
    %v379 = vpop.f32.mrb[0].mxu0
    %v380 = vadd.f32 %v116, %v379
    %381 = vmatprep.mubr.f32.mxu0 0.0
    %382 = vmatmul.mubr.f32.gmra.mrb[0].mxu0 %v162
    %v383 = vpop.f32.mrb[0].mxu0
    %v384 = vadd.f32 %v112, %v383
    %v385 = vpop.f32.mrb[0].mxu0
    %v386 = vadd.f32 %v116, %v385
    %387 = vmatprep.mubr.f32.mxu0 0.0
    %388 = vmatmul.mubr.f32.gmra.mrb[0].mxu0 %v165
    %v389 = vpop.f32.mrb[0].mxu0
    %v390 = vadd.f32 %v112, %v389
    %v391 = vpop.f32.mrb[0].mxu0
    %v392 = vadd.f32 %v116, %v391
    %393 = vmatprep.mubr.f32.mxu0 0.0
    %394 = vmatmul.mubr.f32.gmra.mrb[0].mxu0 %v168
    %v395 = vpop.f32.mrb[0].mxu0
    %v396 = vadd.f32 %v112, %v395
    %v397 = vpop.f32.mrb[0].mxu0
    %v398 = vadd.f32 %v116, %v397
    %399 = vmatprep.mubr.f32.mxu0 0.0
    %400 = vmatmul.mubr.f32.gmra.mrb[0].mxu0 %v171
    %v401 = vpop.f32.mrb[0].mxu0
    %v402 = vadd.f32 %v112, %v401
    %v403 = vpop.f32.mrb[0].mxu0
    %v404 = vadd.f32 %v116, %v403
    %405 = vmatprep.mubr.f32.mxu0 0.0
    %406 = vmatmul.mubr.f32.gmra.mrb[0].mxu0 %v174
    %v407 = vpop.f32.mrb[0].mxu0
    %v408 = vadd.f32 %v112, %v407
    %v409 = vpop.f32.mrb[0].mxu0
    %v410 = vadd.f32 %v116, %v409
    %411 = vmatprep.mubr.f32.mxu0 0.0
    %412 = vmatmul.mubr.f32.gmra.mrb[0].mxu0 %v177
    %v413 = vpop.f32.mrb[0].mxu0
    %v414 = vadd.f32 %v112, %v413
    %v415 = vpop.f32.mrb[0].mxu0
    %v416 = vadd.f32 %v116, %v415
    %417 = vmatprep.mubr.f32.mxu0 0.0
    %418 = vmatmul.mubr.f32.gmra.mrb[0].mxu0 %v180
    %v419 = vpop.f32.mrb[0].mxu0
    %v420 = vadd.f32 %v112, %v419
    %v421 = vpop.f32.mrb[0].mxu0
    %v422 = vadd.f32 %v116, %v421
    %423 = vmatprep.mubr.f32.mxu0 0.0
    %424 = vmatmul.mubr.f32.gmra.mrb[0].mxu0 %v183
    %v425 = vpop.f32.mrb[0].mxu0
    %v426 = vadd.f32 %v112, %v425
    %v427 = vpop.f32.mrb[0].mxu0
    %v428 = vadd.f32 %v116, %v427
    %429 = vmatprep.mubr.f32.mxu0 0.0
    %430 = vmatmul.mubr.f32.gmra.mrb[0].mxu0 %v186
    %v431 = vpop.f32.mrb[0].mxu0
    %v432 = vadd.f32 %v112, %v431
    %v433 = vpop.f32.mrb[0].mxu0
    %v434 = vadd.f32 %v116, %v433
    %435 = vmatprep.mubr.f32.mxu0 0.0
    %436 = vmatmul.mubr.f32.gmra.mrb[0].mxu0 %v189
    %v437 = vpop.f32.mrb[0].mxu0
    %v438 = vadd.f32 %v112, %v437
    %v439 = vpop.f32.mrb[0].mxu0
    %v440 = vadd.f32 %v116, %v439
    %441 = vmatprep.mubr.f32.mxu0 0.0
    %442 = vmatmul.mubr.f32.gmra.mrb[0].mxu0 %v192
    %v443 = vpop.f32.mrb[0].mxu0
    %v444 = vadd.f32 %v112, %v443
    %v445 = vpop.f32.mrb[0].mxu0
    %v446 = vadd.f32 %v116, %v445
    %447 = vmatprep.mubr.f32.mxu0 0.0
    %448 = vmatmul.mubr.f32.gmra.mrb[0].mxu0 %v195
    %v449 = vpop.f32.mrb[0].mxu0
    %v450 = vadd.f32 %v112, %v449
    %v451 = vpop.f32.mrb[0].mxu0
    %v452 = vadd.f32 %v116, %v451
    %453 = vmatprep.mubr.f32.mxu0 0.0
    %454 = vmatmul.mubr.f32.gmra.mrb[0].mxu0 %v198
    %v455 = vpop.f32.mrb[0].mxu0
    %v456 = vadd.f32 %v112, %v455
    %v457 = vpop.f32.mrb[0].mxu0
    %v458 = vadd.f32 %v116, %v457
    %459 = vmatprep.mubr.f32.mxu0 0.0
    %460 = vmatmul.mubr.f32.gmra.mrb[0].mxu0 %v201
    %v461 = vpop.f32.mrb[0].mxu0
    %v462 = vadd.f32 %v112, %v461
    %v463 = vpop.f32.mrb[0].mxu0
    %v464 = vadd.f32 %v116, %v463
    %465 = vmatprep.mubr.f32.mxu0 0.0
    %466 = vmatmul.mubr.f32.gmra.mrb[0].mxu0 %v204
    %v467 = vpop.f32.mrb[0].mxu0
    %v468 = vadd.f32 %v112, %v467
    %v469 = vpop.f32.mrb[0].mxu0
    %v470 = vadd.f32 %v116, %v469
    %471 = vmatprep.mubr.f32.mxu0 0.0
    %472 = vmatmul.mubr.f32.gmra.mrb[0].mxu0 %v207
    %v473 = vpop.f32.mrb[0].mxu0
    %v474 = vadd.f32 %v112, %v473
    %v475 = vpop.f32.mrb[0].mxu0
    %v476 = vadd.f32 %v116, %v475
    %477 = vmatprep.mubr.f32.mxu0 0.0
    %478 = vmatmul.mubr.f32.gmra.mrb[0].mxu0 %v210
    %v479 = vpop.f32.mrb[0].mxu0
    %v480 = vadd.f32 %v112, %v479
    %v481 = vpop.f32.mrb[0].mxu0
    %v482 = vadd.f32 %v116, %v481
    %483 = vmatprep.mubr.f32.mxu0 0.0
    %484 = vmatmul.mubr.f32.gmra.mrb[0].mxu0 %v213
    %v485 = vpop.f32.mrb[0].mxu0
    %v486 = vadd.f32 %v112, %v485
    %v487 = vpop.f32.mrb[0].mxu0
    %v488 = vadd.f32 %v116, %v487
    %489 = vmatprep.mubr.f32.mxu0 0.0
    %490 = vmatmul.mubr.f32.gmra.mrb[0].mxu0 %v216
    %v491 = vpop.f32.mrb[0].mxu0
    %v492 = vadd.f32 %v112, %v491
    %v493 = vpop.f32.mrb[0].mxu0
    %v494 = vadd.f32 %v116, %v493
    %495 = vmatprep.mubr.f32.mxu0 0.0
    %496 = vmatmul.mubr.f32.gmra.mrb[0].mxu0 %v219
    %v497 = vpop.f32.mrb[0].mxu0
    %v498 = vadd.f32 %v112, %v497
    %v499 = vpop.f32.mrb[0].mxu0
    %v500 = vadd.f32 %v116, %v499
    %501 = vmatprep.mubr.f32.mxu0 0.0
    %502 = vmatmul.mubr.f32.gmra.mrb[0].mxu0 %v222
    %v503 = vpop.f32.mrb[0].mxu0
    %v504 = vadd.f32 %v112, %v503
    %v505 = vpop.f32.mrb[0].mxu0
    %v506 = vadd.f32 %v116, %v505
    %507 = vmatprep.mubr.f32.mxu0 0.0
    %508 = vmatmul.mubr.f32.gmra.mrb[0].mxu0 %v225
    %v509 = vpop.f32.mrb[0].mxu0
    %v510 = vadd.f32 %v112, %v509
    %v511 = vpop.f32.mrb[0].mxu0
    %v512 = vadd.f32 %v116, %v511
    %513 = vmatprep.mubr.f32.mxu0 0.0
    %514 = vmatmul.mubr.f32.gmra.mrb[0].mxu0 %v228
    %v515 = vpop.f32.mrb[0].mxu0
    %v516 = vadd.f32 %v112, %v515
    %v517 = vpop.f32.mrb[0].mxu0
    %v518 = vadd.f32 %v116, %v517
    %519 = vmatprep.mubr.f32.mxu0 0.0
    %520 = vmatmul.mubr.f32.gmra.mrb[0].mxu0 %v231
    %v521 = vpop.f32.mrb[0].mxu0
    %v522 = vadd.f32 %v112, %v521
    %v523 = vpop.f32.mrb[0].mxu0
    %v524 = vadd.f32 %v116, %v523
    %525 = vmatprep.mubr.f32.mxu0 0.0
    %526 = vmatmul.mubr.f32.gmra.mrb[0].mxu0 %v234
    %v527 = vpop.f32.mrb[0].mxu0
    %v528 = vadd.f32 %v112, %v527
    %v529 = vpop.f32.mrb[0].mxu0
    %v530 = vadd.f32 %v116, %v529
    %531 = vmatprep.mubr.f32.mxu0 0.0
    %532 = vmatmul.mubr.f32.gmra.mrb[0].mxu0 %v237
    %v533 = vpop.f32.mrb[0].mxu0
    %v534 = vadd.f32 %v112, %v533
    %v535 = vpop.f32.mrb[0].mxu0
    %v536 = vadd.f32 %v116, %v535
    %537 = vmatprep.mubr.f32.mxu0 0.0
    %538 = vmatmul.mubr.f32.gmra.mrb[0].mxu0 %v240
    %v539 = vpop.f32.mrb[0].mxu0
    %v540 = vadd.f32 %v112, %v539
    %v541 = vpop.f32.mrb[0].mxu0
    %v542 = vadd.f32 %v116, %v541
    %543 = vmatprep.mubr.f32.mxu0 0.0
    %544 = vmatmul.mubr.f32.gmra.mrb[0].mxu0 %v243
    %v545 = vpop.f32.mrb[0].mxu0
    %v546 = vadd.f32 %v112, %v545
    %v547 = vpop.f32.mrb[0].mxu0
    %v548 = vadd.f32 %v116, %v547
    %549 = vdwg.mxu0
    %550 = vmatprep.subr.mxu0 0.0
    %551 = vmatpush1.msra.mxu0 %v97
    %552 = vmatprep.subr.mxu0 0.0
    %553 = vmatpush1.msra.mxu0 %v100
    %554 = vmatprep.subr.mxu0 0.0
    %555 = vmatpush1.msra.mxu0 %v103
    %556 = vmatprep.subr.mxu0 0.0
    %557 = vmatpush1.msra.mxu0 %v106
    %558 = vmatprep.subr.mxu0 0.0
    %559 = vmatpush1.msra.mxu0 0.0
    %560 = vmatprep.subr.mxu0 0.0
    %561 = vmatpush1.msra.mxu0 0.0
    %562 = vmatprep.subr.mxu0 0.0
    %563 = vmatpush1.msra.mxu0 0.0
    %564 = vmatprep.subr.mxu0 0.0
    %565 = vmatpush1.msra.mxu0 0.0
    %566 = vmatprep.subr.mxu0 0.0
    %567 = vmatpush1.msra.mxu0 0.0
    %568 = vmatprep.subr.mxu0 0.0
    %569 = vmatpush1.msra.mxu0 0.0
    %570 = vmatprep.subr.mxu0 0.0
    %571 = vmatpush1.msra.mxu0 0.0
    %572 = vmatprep.subr.mxu0 0.0
    %573 = vmatpush1.msra.mxu0 0.0
    %574 = vmatprep.subr.mxu0 0.0
    %575 = vmatpush1.msra.mxu0 0.0
    %576 = vmatprep.subr.mxu0 0.0
    %577 = vmatpush1.msra.mxu0 0.0
    %578 = vmatprep.subr.mxu0 0.0
    %579 = vmatpush1.msra.mxu0 0.0
    %580 = vmatprep.subr.mxu0 0.0
    %581 = vmatpush1.msra.mxu0 0.0
    %582 = vmatprep.subr.mxu0 0.0
    %583 = vmatpush1.msra.mxu0 0.0
    %584 = vmatprep.subr.mxu0 0.0
    %585 = vmatpush1.msra.mxu0 0.0
    %586 = vmatprep.subr.mxu0 0.0
    %587 = vmatpush1.msra.mxu0 0.0
    %588 = vmatprep.subr.mxu0 0.0
    %589 = vmatpush1.msra.mxu0 0.0
    %590 = vmatprep.subr.mxu0 0.0
    %591 = vmatpush1.msra.mxu0 0.0
    %592 = vmatprep.subr.mxu0 0.0
    %593 = vmatpush1.msra.mxu0 0.0
    %594 = vmatprep.subr.mxu0 0.0
    %595 = vmatpush1.msra.mxu0 0.0
    %596 = vmatprep.subr.mxu0 0.0
    %597 = vmatpush1.msra.mxu0 0.0
    %598 = vmatprep.subr.mxu0 0.0
    %599 = vmatpush1.msra.mxu0 0.0
    %600 = vmatprep.subr.mxu0 0.0
    %601 = vmatpush1.msra.mxu0 0.0
    %602 = vmatprep.subr.mxu0 0.0
    %603 = vmatpush1.msra.mxu0 0.0
    %604 = vmatprep.subr.mxu0 0.0
    %605 = vmatpush1.msra.mxu0 0.0
    %606 = vmatprep.subr.mxu0 0.0
    %607 = vmatpush1.msra.mxu0 0.0
    %608 = vmatprep.subr.mxu0 0.0
    %609 = vmatpush1.msra.mxu0 0.0
    %610 = vmatprep.subr.mxu0 0.0
    %611 = vmatpush1.msra.mxu0 0.0
    %612 = vmatprep.subr.mxu0 0.0
    %613 = vmatpush1.msra.mxu0 0.0
    %614 = vmatprep.mubr.f32.mxu0 0.0
    %615 = vmatmul.mubr.f32.gmra.mrb[0].mxu0 %v126
    %v616 = vpop.f32.mrb[0].mxu0
    %v617 = vadd.f32 %v120, %v616
    %v618 = vpop.f32.mrb[0].mxu0
    %619 = vmatprep.mubr.f32.mxu0 0.0
    %620 = vmatmul.mubr.f32.gmra.mrb[0].mxu0 %v129
    %v621 = vpop.f32.mrb[0].mxu0
    %v622 = vadd.f32 %v120, %v621
    %v623 = vpop.f32.mrb[0].mxu0
    %624 = vmatprep.mubr.f32.mxu0 0.0
    %625 = vmatmul.mubr.f32.gmra.mrb[0].mxu0 %v132
    %v626 = vpop.f32.mrb[0].mxu0
    %v627 = vadd.f32 %v120, %v626
    %v628 = vpop.f32.mrb[0].mxu0
    %629 = vmatprep.mubr.f32.mxu0 0.0
    %630 = vmatmul.mubr.f32.gmra.mrb[0].mxu0 %v135
    %v631 = vpop.f32.mrb[0].mxu0
    %v632 = vadd.f32 %v120, %v631
    %v633 = vpop.f32.mrb[0].mxu0
    %634 = vmatprep.mubr.f32.mxu0 0.0
    %635 = vmatmul.mubr.f32.gmra.mrb[0].mxu0 %v138
    %v636 = vpop.f32.mrb[0].mxu0
    %v637 = vadd.f32 %v120, %v636
    %v638 = vpop.f32.mrb[0].mxu0
    %639 = vmatprep.mubr.f32.mxu0 0.0
    %640 = vmatmul.mubr.f32.gmra.mrb[0].mxu0 %v141
    %v641 = vpop.f32.mrb[0].mxu0
    %v642 = vadd.f32 %v120, %v641
    %v643 = vpop.f32.mrb[0].mxu0
    %644 = vmatprep.mubr.f32.mxu0 0.0
    %645 = vmatmul.mubr.f32.gmra.mrb[0].mxu0 %v144
    %v646 = vpop.f32.mrb[0].mxu0
    %v647 = vadd.f32 %v120, %v646
    %v648 = vpop.f32.mrb[0].mxu0
    %649 = vmatprep.mubr.f32.mxu0 0.0
    %650 = vmatmul.mubr.f32.gmra.mrb[0].mxu0 %v147
    %v651 = vpop.f32.mrb[0].mxu0
    %v652 = vadd.f32 %v120, %v651
    %v653 = vpop.f32.mrb[0].mxu0
    %654 = vmatprep.mubr.f32.mxu0 0.0
    %655 = vmatmul.mubr.f32.gmra.mrb[0].mxu0 %v150
    %v656 = vpop.f32.mrb[0].mxu0
    %v657 = vadd.f32 %v120, %v656
    %v658 = vpop.f32.mrb[0].mxu0
    %659 = vmatprep.mubr.f32.mxu0 0.0
    %660 = vmatmul.mubr.f32.gmra.mrb[0].mxu0 %v153
    %v661 = vpop.f32.mrb[0].mxu0
    %v662 = vadd.f32 %v120, %v661
    %v663 = vpop.f32.mrb[0].mxu0
    %664 = vmatprep.mubr.f32.mxu0 0.0
    %665 = vmatmul.mubr.f32.gmra.mrb[0].mxu0 %v156
    %v666 = vpop.f32.mrb[0].mxu0
    %v667 = vadd.f32 %v120, %v666
    %v668 = vpop.f32.mrb[0].mxu0
    %669 = vmatprep.mubr.f32.mxu0 0.0
    %670 = vmatmul.mubr.f32.gmra.mrb[0].mxu0 %v159
    %v671 = vpop.f32.mrb[0].mxu0
    %v672 = vadd.f32 %v120, %v671
    %v673 = vpop.f32.mrb[0].mxu0
    %674 = vmatprep.mubr.f32.mxu0 0.0
    %675 = vmatmul.mubr.f32.gmra.mrb[0].mxu0 %v162
    %v676 = vpop.f32.mrb[0].mxu0
    %v677 = vadd.f32 %v120, %v676
    %v678 = vpop.f32.mrb[0].mxu0
    %679 = vmatprep.mubr.f32.mxu0 0.0
    %680 = vmatmul.mubr.f32.gmra.mrb[0].mxu0 %v165
    %v681 = vpop.f32.mrb[0].mxu0
    %v682 = vadd.f32 %v120, %v681
    %v683 = vpop.f32.mrb[0].mxu0
    %684 = vmatprep.mubr.f32.mxu0 0.0
    %685 = vmatmul.mubr.f32.gmra.mrb[0].mxu0 %v168
    %v686 = vpop.f32.mrb[0].mxu0
    %v687 = vadd.f32 %v120, %v686
    %v688 = vpop.f32.mrb[0].mxu0
    %689 = vmatprep.mubr.f32.mxu0 0.0
    %690 = vmatmul.mubr.f32.gmra.mrb[0].mxu0 %v171
    %v691 = vpop.f32.mrb[0].mxu0
    %v692 = vadd.f32 %v120, %v691
    %v693 = vpop.f32.mrb[0].mxu0
    %694 = vmatprep.mubr.f32.mxu0 0.0
    %695 = vmatmul.mubr.f32.gmra.mrb[0].mxu0 %v174
    %v696 = vpop.f32.mrb[0].mxu0
    %v697 = vadd.f32 %v120, %v696
    %v698 = vpop.f32.mrb[0].mxu0
    %699 = vmatprep.mubr.f32.mxu0 0.0
    %700 = vmatmul.mubr.f32.gmra.mrb[0].mxu0 %v177
    %v701 = vpop.f32.mrb[0].mxu0
    %v702 = vadd.f32 %v120, %v701
    %v703 = vpop.f32.mrb[0].mxu0
    %704 = vmatprep.mubr.f32.mxu0 0.0
    %705 = vmatmul.mubr.f32.gmra.mrb[0].mxu0 %v180
    %v706 = vpop.f32.mrb[0].mxu0
    %v707 = vadd.f32 %v120, %v706
    %v708 = vpop.f32.mrb[0].mxu0
    %709 = vmatprep.mubr.f32.mxu0 0.0
    %710 = vmatmul.mubr.f32.gmra.mrb[0].mxu0 %v183
    %v711 = vpop.f32.mrb[0].mxu0
    %v712 = vadd.f32 %v120, %v711
    %v713 = vpop.f32.mrb[0].mxu0
    %714 = vmatprep.mubr.f32.mxu0 0.0
    %715 = vmatmul.mubr.f32.gmra.mrb[0].mxu0 %v186
    %v716 = vpop.f32.mrb[0].mxu0
    %v717 = vadd.f32 %v120, %v716
    %v718 = vpop.f32.mrb[0].mxu0
    %719 = vmatprep.mubr.f32.mxu0 0.0
    %720 = vmatmul.mubr.f32.gmra.mrb[0].mxu0 %v189
    %v721 = vpop.f32.mrb[0].mxu0
    %v722 = vadd.f32 %v120, %v721
    %v723 = vpop.f32.mrb[0].mxu0
    %724 = vmatprep.mubr.f32.mxu0 0.0
    %725 = vmatmul.mubr.f32.gmra.mrb[0].mxu0 %v192
    %v726 = vpop.f32.mrb[0].mxu0
    %v727 = vadd.f32 %v120, %v726
    %v728 = vpop.f32.mrb[0].mxu0
    %729 = vmatprep.mubr.f32.mxu0 0.0
    %730 = vmatmul.mubr.f32.gmra.mrb[0].mxu0 %v195
    %v731 = vpop.f32.mrb[0].mxu0
    %v732 = vadd.f32 %v120, %v731
    %v733 = vpop.f32.mrb[0].mxu0
    %734 = vmatprep.mubr.f32.mxu0 0.0
    %735 = vmatmul.mubr.f32.gmra.mrb[0].mxu0 %v198
    %v736 = vpop.f32.mrb[0].mxu0
    %v737 = vadd.f32 %v120, %v736
    %v738 = vpop.f32.mrb[0].mxu0
    %739 = vmatprep.mubr.f32.mxu0 0.0
    %740 = vmatmul.mubr.f32.gmra.mrb[0].mxu0 %v201
    %v741 = vpop.f32.mrb[0].mxu0
    %v742 = vadd.f32 %v120, %v741
    %v743 = vpop.f32.mrb[0].mxu0
    %744 = vmatprep.mubr.f32.mxu0 0.0
    %745 = vmatmul.mubr.f32.gmra.mrb[0].mxu0 %v204
    %v746 = vpop.f32.mrb[0].mxu0
    %v747 = vadd.f32 %v120, %v746
    %v748 = vpop.f32.mrb[0].mxu0
    %749 = vmatprep.mubr.f32.mxu0 0.0
    %750 = vmatmul.mubr.f32.gmra.mrb[0].mxu0 %v207
    %v751 = vpop.f32.mrb[0].mxu0
    %v752 = vadd.f32 %v120, %v751
    %v753 = vpop.f32.mrb[0].mxu0
    %754 = vmatprep.mubr.f32.mxu0 0.0
    %755 = vmatmul.mubr.f32.gmra.mrb[0].mxu0 %v210
    %v756 = vpop.f32.mrb[0].mxu0
    %v757 = vadd.f32 %v120, %v756
    %v758 = vpop.f32.mrb[0].mxu0
    %759 = vmatprep.mubr.f32.mxu0 0.0
    %760 = vmatmul.mubr.f32.gmra.mrb[0].mxu0 %v213
    %v761 = vpop.f32.mrb[0].mxu0
    %v762 = vadd.f32 %v120, %v761
    %v763 = vpop.f32.mrb[0].mxu0
    %764 = vmatprep.mubr.f32.mxu0 0.0
    %765 = vmatmul.mubr.f32.gmra.mrb[0].mxu0 %v216
    %v766 = vpop.f32.mrb[0].mxu0
    %v767 = vadd.f32 %v120, %v766
    %v768 = vpop.f32.mrb[0].mxu0
    %769 = vmatprep.mubr.f32.mxu0 0.0
    %770 = vmatmul.mubr.f32.gmra.mrb[0].mxu0 %v219
    %v771 = vpop.f32.mrb[0].mxu0
    %v772 = vadd.f32 %v120, %v771
    %v773 = vpop.f32.mrb[0].mxu0
    %774 = vmatprep.mubr.f32.mxu0 0.0
    %775 = vmatmul.mubr.f32.gmra.mrb[0].mxu0 %v222
    %v776 = vpop.f32.mrb[0].mxu0
    %v777 = vadd.f32 %v120, %v776
    %v778 = vpop.f32.mrb[0].mxu0
    %779 = vmatprep.mubr.f32.mxu0 0.0
    %780 = vmatmul.mubr.f32.gmra.mrb[0].mxu0 %v225
    %v781 = vpop.f32.mrb[0].mxu0
    %v782 = vadd.f32 %v120, %v781
    %v783 = vpop.f32.mrb[0].mxu0
    %784 = vmatprep.mubr.f32.mxu0 0.0
    %785 = vmatmul.mubr.f32.gmra.mrb[0].mxu0 %v228
    %v786 = vpop.f32.mrb[0].mxu0
    %v787 = vadd.f32 %v120, %v786
    %v788 = vpop.f32.mrb[0].mxu0
    %789 = vmatprep.mubr.f32.mxu0 0.0
    %790 = vmatmul.mubr.f32.gmra.mrb[0].mxu0 %v231
    %v791 = vpop.f32.mrb[0].mxu0
    %v792 = vadd.f32 %v120, %v791
    %v793 = vpop.f32.mrb[0].mxu0
    %794 = vmatprep.mubr.f32.mxu0 0.0
    %795 = vmatmul.mubr.f32.gmra.mrb[0].mxu0 %v234
    %v796 = vpop.f32.mrb[0].mxu0
    %v797 = vadd.f32 %v120, %v796
    %v798 = vpop.f32.mrb[0].mxu0
    %799 = vmatprep.mubr.f32.mxu0 0.0
    %800 = vmatmul.mubr.f32.gmra.mrb[0].mxu0 %v237
    %v801 = vpop.f32.mrb[0].mxu0
    %v802 = vadd.f32 %v120, %v801
    %v803 = vpop.f32.mrb[0].mxu0
    %804 = vmatprep.mubr.f32.mxu0 0.0
    %805 = vmatmul.mubr.f32.gmra.mrb[0].mxu0 %v240
    %v806 = vpop.f32.mrb[0].mxu0
    %v807 = vadd.f32 %v120, %v806
    %v808 = vpop.f32.mrb[0].mxu0
    %809 = vmatprep.mubr.f32.mxu0 0.0
    %810 = vmatmul.mubr.f32.gmra.mrb[0].mxu0 %v243
    %v811 = vpop.f32.mrb[0].mxu0
    %v812 = vadd.f32 %v120, %v811
    %v813 = vpop.f32.mrb[0].mxu0
    %814 = vdwg.mxu0
    %v815 = vmax.f32 %v312, 0.0
    %v816 = vmax.f32 %v314, 0.0
    %v817 = vmax.f32 %v617, 0.0
    %v818 = vmax.f32 %v318, 0.0
    %v819 = vmax.f32 %v320, 0.0
    %v820 = vmax.f32 %v622, 0.0
    %v821 = vmax.f32 %v324, 0.0
    %v822 = vmax.f32 %v326, 0.0
    %v823 = vmax.f32 %v627, 0.0
    %v824 = vmax.f32 %v330, 0.0
    %v825 = vmax.f32 %v332, 0.0
    %v826 = vmax.f32 %v632, 0.0
    %v827 = vmax.f32 %v336, 0.0
    %v828 = vmax.f32 %v338, 0.0
    %v829 = vmax.f32 %v637, 0.0
    %v830 = vmax.f32 %v342, 0.0
    %v831 = vmax.f32 %v344, 0.0
    %v832 = vmax.f32 %v642, 0.0
    %v833 = vmax.f32 %v348, 0.0
    %v834 = vmax.f32 %v350, 0.0
    %v835 = vmax.f32 %v647, 0.0
    %v836 = vmax.f32 %v354, 0.0
    %v837 = vmax.f32 %v356, 0.0
    %v838 = vmax.f32 %v652, 0.0
    %v839 = vmax.f32 %v360, 0.0
    %v840 = vmax.f32 %v362, 0.0
    %v841 = vmax.f32 %v657, 0.0
    %v842 = vmax.f32 %v366, 0.0
    %v843 = vmax.f32 %v368, 0.0
    %v844 = vmax.f32 %v662, 0.0
    %v845 = vmax.f32 %v372, 0.0
    %v846 = vmax.f32 %v374, 0.0
    %v847 = vmax.f32 %v667, 0.0
    %v848 = vmax.f32 %v378, 0.0
    %v849 = vmax.f32 %v380, 0.0
    %v850 = vmax.f32 %v672, 0.0
    %v851 = vmax.f32 %v384, 0.0
    %v852 = vmax.f32 %v386, 0.0
    %v853 = vmax.f32 %v677, 0.0
    %v854 = vmax.f32 %v390, 0.0
    %v855 = vmax.f32 %v392, 0.0
    %v856 = vmax.f32 %v682, 0.0
    %v857 = vmax.f32 %v396, 0.0
    %v858 = vmax.f32 %v398, 0.0
    %v859 = vmax.f32 %v687, 0.0
    %v860 = vmax.f32 %v402, 0.0
    %v861 = vmax.f32 %v404, 0.0
    %v862 = vmax.f32 %v692, 0.0
    %v863 = vmax.f32 %v408, 0.0
    %v864 = vmax.f32 %v410, 0.0
    %v865 = vmax.f32 %v697, 0.0
    %v866 = vmax.f32 %v414, 0.0
    %v867 = vmax.f32 %v416, 0.0
    %v868 = vmax.f32 %v702, 0.0
    %v869 = vmax.f32 %v420, 0.0
    %v870 = vmax.f32 %v422, 0.0
    %v871 = vmax.f32 %v707, 0.0
    %v872 = vmax.f32 %v426, 0.0
    %v873 = vmax.f32 %v428, 0.0
    %v874 = vmax.f32 %v712, 0.0
    %v875 = vmax.f32 %v432, 0.0
    %v876 = vmax.f32 %v434, 0.0
    %v877 = vmax.f32 %v717, 0.0
    %v878 = vmax.f32 %v438, 0.0
    %v879 = vmax.f32 %v440, 0.0
    %v880 = vmax.f32 %v722, 0.0
    %v881 = vmax.f32 %v444, 0.0
    %v882 = vmax.f32 %v446, 0.0
    %v883 = vmax.f32 %v727, 0.0
    %v884 = vmax.f32 %v450, 0.0
    %v885 = vmax.f32 %v452, 0.0
    %v886 = vmax.f32 %v732, 0.0
    %v887 = vmax.f32 %v456, 0.0
    %v888 = vmax.f32 %v458, 0.0
    %v889 = vmax.f32 %v737, 0.0
    %v890 = vmax.f32 %v462, 0.0
    %v891 = vmax.f32 %v464, 0.0
    %v892 = vmax.f32 %v742, 0.0
    %v893 = vmax.f32 %v468, 0.0
    %v894 = vmax.f32 %v470, 0.0
    %v895 = vmax.f32 %v747, 0.0
    %v896 = vmax.f32 %v474, 0.0
    %v897 = vmax.f32 %v476, 0.0
    %v898 = vmax.f32 %v752, 0.0
    %v899 = vmax.f32 %v480, 0.0
    %v900 = vmax.f32 %v482, 0.0
    %v901 = vmax.f32 %v757, 0.0
    %v902 = vmax.f32 %v486, 0.0
    %v903 = vmax.f32 %v488, 0.0
    %v904 = vmax.f32 %v762, 0.0
    %v905 = vmax.f32 %v492, 0.0
    %v906 = vmax.f32 %v494, 0.0
    %v907 = vmax.f32 %v767, 0.0
    %v908 = vmax.f32 %v498, 0.0
    %v909 = vmax.f32 %v500, 0.0
    %v910 = vmax.f32 %v772, 0.0
    %v911 = vmax.f32 %v504, 0.0
    %v912 = vmax.f32 %v506, 0.0
    %v913 = vmax.f32 %v777, 0.0
    %v914 = vmax.f32 %v510, 0.0
    %v915 = vmax.f32 %v512, 0.0
    %v916 = vmax.f32 %v782, 0.0
    %v917 = vmax.f32 %v516, 0.0
    %v918 = vmax.f32 %v518, 0.0
    %v919 = vmax.f32 %v787, 0.0
    %v920 = vmax.f32 %v522, 0.0
    %v921 = vmax.f32 %v524, 0.0
    %v922 = vmax.f32 %v792, 0.0
    %v923 = vmax.f32 %v528, 0.0
    %v924 = vmax.f32 %v530, 0.0
    %v925 = vmax.f32 %v797, 0.0
    %v926 = vmax.f32 %v534, 0.0
    %v927 = vmax.f32 %v536, 0.0
    %v928 = vmax.f32 %v802, 0.0
    %v929 = vmax.f32 %v540, 0.0
    %v930 = vmax.f32 %v542, 0.0
    %v931 = vmax.f32 %v807, 0.0
    %v932 = vmax.f32 %v546, 0.0
    %v933 = vmax.f32 %v548, 0.0
    %v934 = vmax.f32 %v812, 0.0
    %v935 = vmax.f32 %v815, %v818
    %v936 = vmax.f32 %v935, %v821
    %v937 = vmax.f32 %v936, %v824
    %v938 = vmax.f32 %v937, %v827
    %v939 = vrot.slane %v938, 4
    %v940 = vmax.f32 %v938, %v939
    %v941 = vrot.slane %v940, 2
    %v942 = vmax.f32 %v940, %v941
    %v943 = vrot.slane %v942, 1
    %v944 = vmax.f32 %v942, %v943
    %v945 = vmax.f32 %v816, %v819
    %v946 = vmax.f32 %v945, %v822
    %v947 = vmax.f32 %v946, %v825
    %v948 = vmax.f32 %v947, %v828
    %v949 = vrot.slane %v948, 4
    %v950 = vmax.f32 %v948, %v949
    %v951 = vrot.slane %v950, 2
    %v952 = vmax.f32 %v950, %v951
    %v953 = vrot.slane %v952, 1
    %v954 = vmax.f32 %v952, %v953
    %v955 = vmax.f32 %v817, %v820
    %v956 = vmax.f32 %v955, %v823
    %v957 = vmax.f32 %v956, %v826
    %v958 = vmax.f32 %v957, %v829
    %v959 = vrot.slane %v958, 4
    %v960 = vmax.f32 %v958, %v959
    %v961 = vrot.slane %v960, 2
    %v962 = vmax.f32 %v960, %v961
    %v963 = vrot.slane %v962, 1
    %v964 = vmax.f32 %v962, %v963
    %v965 = vmax.f32 %v830, %v833
    %v966 = vmax.f32 %v965, %v836
    %v967 = vmax.f32 %v966, %v839
    %v968 = vmax.f32 %v967, %v842
    %v969 = vrot.slane %v968, 4
    %v970 = vmax.f32 %v968, %v969
    %v971 = vrot.slane %v970, 2
    %v972 = vmax.f32 %v970, %v971
    %v973 = vrot.slane %v972, 1
    %v974 = vmax.f32 %v972, %v973
    %v975 = vmax.f32 %v831, %v834
    %v976 = vmax.f32 %v975, %v837
    %v977 = vmax.f32 %v976, %v840
    %v978 = vmax.f32 %v977, %v843
    %v979 = vrot.slane %v978, 4
    %v980 = vmax.f32 %v978, %v979
    %v981 = vrot.slane %v980, 2
    %v982 = vmax.f32 %v980, %v981
    %v983 = vrot.slane %v982, 1
    %v984 = vmax.f32 %v982, %v983
    %v985 = vmax.f32 %v832, %v835
    %v986 = vmax.f32 %v985, %v838
    %v987 = vmax.f32 %v986, %v841
    %v988 = vmax.f32 %v987, %v844
    %v989 = vrot.slane %v988, 4
    %v990 = vmax.f32 %v988, %v989
    %v991 = vrot.slane %v990, 2
    %v992 = vmax.f32 %v990, %v991
    %v993 = vrot.slane %v992, 1
    %v994 = vmax.f32 %v992, %v993
    %v995 = vmax.f32 %v845, %v848
    %v996 = vmax.f32 %v995, %v851
    %v997 = vmax.f32 %v996, %v854
    %v998 = vmax.f32 %v997, %v857
    %v999 = vrot.slane %v998, 4
    %v1000 = vmax.f32 %v998, %v999
    %v1001 = vrot.slane %v1000, 2
    %v1002 = vmax.f32 %v1000, %v1001
    %v1003 = vrot.slane %v1002, 1
    %v1004 = vmax.f32 %v1002, %v1003
    %v1005 = vmax.f32 %v846, %v849
    %v1006 = vmax.f32 %v1005, %v852
    %v1007 = vmax.f32 %v1006, %v855
    %v1008 = vmax.f32 %v1007, %v858
    %v1009 = vrot.slane %v1008, 4
    %v1010 = vmax.f32 %v1008, %v1009
    %v1011 = vrot.slane %v1010, 2
    %v1012 = vmax.f32 %v1010, %v1011
    %v1013 = vrot.slane %v1012, 1
    %v1014 = vmax.f32 %v1012, %v1013
    %v1015 = vmax.f32 %v847, %v850
    %v1016 = vmax.f32 %v1015, %v853
    %v1017 = vmax.f32 %v1016, %v856
    %v1018 = vmax.f32 %v1017, %v859
    %v1019 = vrot.slane %v1018, 4
    %v1020 = vmax.f32 %v1018, %v1019
    %v1021 = vrot.slane %v1020, 2
    %v1022 = vmax.f32 %v1020, %v1021
    %v1023 = vrot.slane %v1022, 1
    %v1024 = vmax.f32 %v1022, %v1023
    %v1025 = vmax.f32 %v860, %v863
    %v1026 = vmax.f32 %v1025, %v866
    %v1027 = vmax.f32 %v1026, %v869
    %v1028 = vmax.f32 %v1027, %v872
    %v1029 = vrot.slane %v1028, 4
    %v1030 = vmax.f32 %v1028, %v1029
    %v1031 = vrot.slane %v1030, 2
    %v1032 = vmax.f32 %v1030, %v1031
    %v1033 = vrot.slane %v1032, 1
    %v1034 = vmax.f32 %v1032, %v1033
    %v1035 = vmax.f32 %v861, %v864
    %v1036 = vmax.f32 %v1035, %v867
    %v1037 = vmax.f32 %v1036, %v870
    %v1038 = vmax.f32 %v1037, %v873
    %v1039 = vrot.slane %v1038, 4
    %v1040 = vmax.f32 %v1038, %v1039
    %v1041 = vrot.slane %v1040, 2
    %v1042 = vmax.f32 %v1040, %v1041
    %v1043 = vrot.slane %v1042, 1
    %v1044 = vmax.f32 %v1042, %v1043
    %v1045 = vmax.f32 %v862, %v865
    %v1046 = vmax.f32 %v1045, %v868
    %v1047 = vmax.f32 %v1046, %v871
    %v1048 = vmax.f32 %v1047, %v874
    %v1049 = vrot.slane %v1048, 4
    %v1050 = vmax.f32 %v1048, %v1049
    %v1051 = vrot.slane %v1050, 2
    %v1052 = vmax.f32 %v1050, %v1051
    %v1053 = vrot.slane %v1052, 1
    %v1054 = vmax.f32 %v1052, %v1053
    %v1055 = vmax.f32 %v875, %v878
    %v1056 = vmax.f32 %v1055, %v881
    %v1057 = vmax.f32 %v1056, %v884
    %v1058 = vmax.f32 %v1057, %v887
    %v1059 = vrot.slane %v1058, 4
    %v1060 = vmax.f32 %v1058, %v1059
    %v1061 = vrot.slane %v1060, 2
    %v1062 = vmax.f32 %v1060, %v1061
    %v1063 = vrot.slane %v1062, 1
    %v1064 = vmax.f32 %v1062, %v1063
    %v1065 = vmax.f32 %v876, %v879
    %v1066 = vmax.f32 %v1065, %v882
    %v1067 = vmax.f32 %v1066, %v885
    %v1068 = vmax.f32 %v1067, %v888
    %v1069 = vrot.slane %v1068, 4
    %v1070 = vmax.f32 %v1068, %v1069
    %v1071 = vrot.slane %v1070, 2
    %v1072 = vmax.f32 %v1070, %v1071
    %v1073 = vrot.slane %v1072, 1
    %v1074 = vmax.f32 %v1072, %v1073
    %v1075 = vmax.f32 %v877, %v880
    %v1076 = vmax.f32 %v1075, %v883
    %v1077 = vmax.f32 %v1076, %v886
    %v1078 = vmax.f32 %v1077, %v889
    %v1079 = vrot.slane %v1078, 4
    %v1080 = vmax.f32 %v1078, %v1079
    %v1081 = vrot.slane %v1080, 2
    %v1082 = vmax.f32 %v1080, %v1081
    %v1083 = vrot.slane %v1082, 1
    %v1084 = vmax.f32 %v1082, %v1083
    %v1085 = vmax.f32 %v890, %v893
    %v1086 = vmax.f32 %v1085, %v896
    %v1087 = vmax.f32 %v1086, %v899
    %v1088 = vmax.f32 %v1087, %v902
    %v1089 = vrot.slane %v1088, 4
    %v1090 = vmax.f32 %v1088, %v1089
    %v1091 = vrot.slane %v1090, 2
    %v1092 = vmax.f32 %v1090, %v1091
    %v1093 = vrot.slane %v1092, 1
    %v1094 = vmax.f32 %v1092, %v1093
    %v1095 = vmax.f32 %v891, %v894
    %v1096 = vmax.f32 %v1095, %v897
    %v1097 = vmax.f32 %v1096, %v900
    %v1098 = vmax.f32 %v1097, %v903
    %v1099 = vrot.slane %v1098, 4
    %v1100 = vmax.f32 %v1098, %v1099
    %v1101 = vrot.slane %v1100, 2
    %v1102 = vmax.f32 %v1100, %v1101
    %v1103 = vrot.slane %v1102, 1
    %v1104 = vmax.f32 %v1102, %v1103
    %v1105 = vmax.f32 %v892, %v895
    %v1106 = vmax.f32 %v1105, %v898
    %v1107 = vmax.f32 %v1106, %v901
    %v1108 = vmax.f32 %v1107, %v904
    %v1109 = vrot.slane %v1108, 4
    %v1110 = vmax.f32 %v1108, %v1109
    %v1111 = vrot.slane %v1110, 2
    %v1112 = vmax.f32 %v1110, %v1111
    %v1113 = vrot.slane %v1112, 1
    %v1114 = vmax.f32 %v1112, %v1113
    %v1115 = vmax.f32 %v905, %v908
    %v1116 = vmax.f32 %v1115, %v911
    %v1117 = vmax.f32 %v1116, %v914
    %v1118 = vmax.f32 %v1117, %v917
    %v1119 = vrot.slane %v1118, 4
    %v1120 = vmax.f32 %v1118, %v1119
    %v1121 = vrot.slane %v1120, 2
    %v1122 = vmax.f32 %v1120, %v1121
    %v1123 = vrot.slane %v1122, 1
    %v1124 = vmax.f32 %v1122, %v1123
    %v1125 = vmax.f32 %v906, %v909
    %v1126 = vmax.f32 %v1125, %v912
    %v1127 = vmax.f32 %v1126, %v915
    %v1128 = vmax.f32 %v1127, %v918
    %v1129 = vrot.slane %v1128, 4
    %v1130 = vmax.f32 %v1128, %v1129
    %v1131 = vrot.slane %v1130, 2
    %v1132 = vmax.f32 %v1130, %v1131
    %v1133 = vrot.slane %v1132, 1
    %v1134 = vmax.f32 %v1132, %v1133
    %v1135 = vmax.f32 %v907, %v910
    %v1136 = vmax.f32 %v1135, %v913
    %v1137 = vmax.f32 %v1136, %v916
    %v1138 = vmax.f32 %v1137, %v919
    %v1139 = vrot.slane %v1138, 4
    %v1140 = vmax.f32 %v1138, %v1139
    %v1141 = vrot.slane %v1140, 2
    %v1142 = vmax.f32 %v1140, %v1141
    %v1143 = vrot.slane %v1142, 1
    %v1144 = vmax.f32 %v1142, %v1143
    %v1145 = vmax.f32 %v920, %v923
    %v1146 = vmax.f32 %v1145, %v926
    %v1147 = vmax.f32 %v1146, %v929
    %v1148 = vmax.f32 %v1147, %v932
    %v1149 = vrot.slane %v1148, 4
    %v1150 = vmax.f32 %v1148, %v1149
    %v1151 = vrot.slane %v1150, 2
    %v1152 = vmax.f32 %v1150, %v1151
    %v1153 = vrot.slane %v1152, 1
    %v1154 = vmax.f32 %v1152, %v1153
    %v1155 = vmax.f32 %v921, %v924
    %v1156 = vmax.f32 %v1155, %v927
    %v1157 = vmax.f32 %v1156, %v930
    %v1158 = vmax.f32 %v1157, %v933
    %v1159 = vrot.slane %v1158, 4
    %v1160 = vmax.f32 %v1158, %v1159
    %v1161 = vrot.slane %v1160, 2
    %v1162 = vmax.f32 %v1160, %v1161
    %v1163 = vrot.slane %v1162, 1
    %v1164 = vmax.f32 %v1162, %v1163
    %v1165 = vmax.f32 %v922, %v925
    %v1166 = vmax.f32 %v1165, %v928
    %v1167 = vmax.f32 %v1166, %v931
    %v1168 = vmax.f32 %v1167, %v934
    %v1169 = vrot.slane %v1168, 4
    %v1170 = vmax.f32 %v1168, %v1169
    %v1171 = vrot.slane %v1170, 2
    %v1172 = vmax.f32 %v1170, %v1171
    %v1173 = vrot.slane %v1172, 1
    %v1174 = vmax.f32 %v1172, %v1173
    %v1175 = vld [vmem:[%s3] sm:$0xff]
    %v1176 = vld [vmem:[%s3 + $0x8] sm:$0xff]
    %v1177 = vld [vmem:[%s3 + $0x10] sm:$0xff]
    %v1178 = vld [vmem:[%s3 + $0x18] sm:$0xff]
    %v1179 = vld [vmem:[%s3 + $0x20] sm:$0xff]
    %v1180 = vld [vmem:[%s3 + $0x28] sm:$0xff]
    %v1181 = vld [vmem:[%s3 + $0x30] sm:$0xff]
    %v1182 = vld [vmem:[%s3 + $0x38] sm:$0xff]
    %v1183 = vld [vmem:[%s3 + $0x40] sm:$0xff]
    %v1184 = vld [vmem:[%s3 + $0x48] sm:$0xff]
    %v1185 = vld [vmem:[%s3 + $0x50] sm:$0xff]
    %v1186 = vld [vmem:[%s3 + $0x58] sm:$0xff]
    %v1187 = vld [vmem:[%s3 + $0x60] sm:$0xff]
    %v1188 = vld [vmem:[%s3 + $0x68] sm:$0xff]
    %v1189 = vld [vmem:[%s3 + $0x70] sm:$0xff]
    %v1190 = vld [vmem:[%s3 + $0x78] sm:$0xff]
    %v1191 = vld [vmem:[%s3 + $0x80] sm:$0xff]
    %v1192 = vld [vmem:[%s3 + $0x88] sm:$0xff]
    %v1193 = vld [vmem:[%s3 + $0x90] sm:$0xff]
    %v1194 = vld [vmem:[%s3 + $0x98] sm:$0xff]
    %v1195 = vld [vmem:[%s3 + $0xa0] sm:$0xff]
    %v1196 = vld [vmem:[%s3 + $0xa8] sm:$0xff]
    %v1197 = vld [vmem:[%s3 + $0xb0] sm:$0xff]
    %v1198 = vld [vmem:[%s3 + $0xb8] sm:$0xff]
    %v1199 = vld [vmem:[%s3 + $0xc0] sm:$0xff]
    %v1200 = vld [vmem:[%s3 + $0xc8] sm:$0xff]
    %v1201 = vld [vmem:[%s3 + $0xd0] sm:$0xff]
    %v1202 = vld [vmem:[%s3 + $0xd8] sm:$0xff]
    %v1203 = vld [vmem:[%s3 + $0xe0] sm:$0xff]
    %v1204 = vld [vmem:[%s3 + $0xe8] sm:$0xff]
    %v1205 = vld [vmem:[%s3 + $0xf0] sm:$0xff]
    %v1206 = vld [vmem:[%s3 + $0xf8] sm:$0xff]
    %v1207 = vld [vmem:[%s3 + $0x100] sm:$0xff]
    %v1208 = vld [vmem:[%s3 + $0x108] sm:$0xff]
    %v1209 = vld [vmem:[%s3 + $0x110] sm:$0xff]
    %v1210 = vld [vmem:[%s3 + $0x118] sm:$0xff]
    %v1211 = vld [vmem:[%s3 + $0x120] sm:$0xff]
    %v1212 = vld [vmem:[%s3 + $0x128] sm:$0xff]
    %v1213 = vld [vmem:[%s3 + $0x130] sm:$0xff]
    %v1214 = vld [vmem:[%s3 + $0x138] sm:$0xff]
    %v1215 = vld [vmem:[%s3 + $0x140] sm:$0xff]
    %v1216 = vld [vmem:[%s3 + $0x148] sm:$0xff]
    %v1217 = vld [vmem:[%s3 + $0x150] sm:$0xff]
    %v1218 = vld [vmem:[%s3 + $0x158] sm:$0xff]
    %v1219 = vld [vmem:[%s3 + $0x160] sm:$0xff]
    %v1220 = vld [vmem:[%s3 + $0x168] sm:$0xff]
    %v1221 = vld [vmem:[%s3 + $0x170] sm:$0xff]
    %v1222 = vld [vmem:[%s3 + $0x178] sm:$0xff]
    %v1223 = vld [vmem:[%s4] sm:$0x1]
    %v1225 = vlaneseq
    %v1226 = vshrl.u32 %v1225, 7
    %v1227 = vsub.s32 0, %v1226
    %v1228 = vrot.slane %v1223, %v1227
    %vm1254 = vcmask 1041409
    %v1255 = vsel %vm1254, %v974, %v944
    %vm1256 = vcmask 1042434
    %v1257 = vsel %vm1256, %v1004, %v1255
    %vm1258 = vcmask 1043459
    %v1259 = vsel %vm1258, %v1034, %v1257
    %vm1260 = vcmask 1044484
    %v1261 = vsel %vm1260, %v1064, %v1259
    %vm1262 = vcmask 1045509
    %v1263 = vsel %vm1262, %v1094, %v1261
    %vm1264 = vcmask 1046534
    %v1265 = vsel %vm1264, %v1124, %v1263
    %vm1266 = vcmask 1047559
    %v1267 = vsel %vm1266, %v1154, %v1265
    %v1268 = vsel %vm1254, %v984, %v954
    %v1269 = vsel %vm1256, %v1014, %v1268
    %v1270 = vsel %vm1258, %v1044, %v1269
    %v1271 = vsel %vm1260, %v1074, %v1270
    %v1272 = vsel %vm1262, %v1104, %v1271
    %v1273 = vsel %vm1264, %v1134, %v1272
    %v1274 = vsel %vm1266, %v1164, %v1273
    %v1275 = vsel %vm1254, %v994, %v964
    %v1276 = vsel %vm1256, %v1024, %v1275
    %v1277 = vsel %vm1258, %v1054, %v1276
    %v1278 = vsel %vm1260, %v1084, %v1277
    %v1279 = vsel %vm1262, %v1114, %v1278
    %v1280 = vsel %vm1264, %v1144, %v1279
    %v1281 = vsel %vm1266, %v1174, %v1280
    %1285 = vmatprep.subr.mxu0 0.0
    %1286 = vmatpush1.msra.mxu0 %v1175
    %1287 = vmatprep.subr.mxu0 0.0
    %1288 = vmatpush1.msra.mxu0 %v1176
    %1289 = vmatprep.subr.mxu0 0.0
    %1290 = vmatpush1.msra.mxu0 %v1177
    %1291 = vmatprep.subr.mxu0 0.0
    %1292 = vmatpush1.msra.mxu0 %v1178
    %1293 = vmatprep.subr.mxu0 0.0
    %1294 = vmatpush1.msra.mxu0 %v1179
    %1295 = vmatprep.subr.mxu0 0.0
    %1296 = vmatpush1.msra.mxu0 %v1180
    %1297 = vmatprep.subr.mxu0 0.0
    %1298 = vmatpush1.msra.mxu0 %v1181
    %1299 = vmatprep.subr.mxu0 0.0
    %1300 = vmatpush1.msra.mxu0 %v1182
    %1301 = vmatprep.subr.mxu0 0.0
    %1302 = vmatpush1.msra.mxu0 %v1183
    %1303 = vmatprep.subr.mxu0 0.0
    %1304 = vmatpush1.msra.mxu0 %v1184
    %1305 = vmatprep.subr.mxu0 0.0
    %1306 = vmatpush1.msra.mxu0 %v1185
    %1307 = vmatprep.subr.mxu0 0.0
    %1308 = vmatpush1.msra.mxu0 %v1186
    %1309 = vmatprep.subr.mxu0 0.0
    %1310 = vmatpush1.msra.mxu0 %v1187
    %1311 = vmatprep.subr.mxu0 0.0
    %1312 = vmatpush1.msra.mxu0 %v1188
    %1313 = vmatprep.subr.mxu0 0.0
    %1314 = vmatpush1.msra.mxu0 %v1189
    %1315 = vmatprep.subr.mxu0 0.0
    %1316 = vmatpush1.msra.mxu0 %v1190
    %1317 = vmatprep.subr.mxu0 0.0
    %1318 = vmatpush1.msra.mxu0 %v1191
    %1319 = vmatprep.subr.mxu0 0.0
    %1320 = vmatpush1.msra.mxu0 %v1192
    %1321 = vmatprep.subr.mxu0 0.0
    %1322 = vmatpush1.msra.mxu0 %v1193
    %1323 = vmatprep.subr.mxu0 0.0
    %1324 = vmatpush1.msra.mxu0 %v1194
    %1325 = vmatprep.subr.mxu0 0.0
    %1326 = vmatpush1.msra.mxu0 %v1195
    %1327 = vmatprep.subr.mxu0 0.0
    %1328 = vmatpush1.msra.mxu0 %v1196
    %1329 = vmatprep.subr.mxu0 0.0
    %1330 = vmatpush1.msra.mxu0 %v1197
    %1331 = vmatprep.subr.mxu0 0.0
    %1332 = vmatpush1.msra.mxu0 %v1198
    %1333 = vmatprep.subr.mxu0 0.0
    %1334 = vmatpush1.msra.mxu0 %v1199
    %1335 = vmatprep.subr.mxu0 0.0
    %1336 = vmatpush1.msra.mxu0 %v1200
    %1337 = vmatprep.subr.mxu0 0.0
    %1338 = vmatpush1.msra.mxu0 %v1201
    %1339 = vmatprep.subr.mxu0 0.0
    %1340 = vmatpush1.msra.mxu0 %v1202
    %1341 = vmatprep.subr.mxu0 0.0
    %1342 = vmatpush1.msra.mxu0 %v1203
    %1343 = vmatprep.subr.mxu0 0.0
    %1344 = vmatpush1.msra.mxu0 %v1204
    %1345 = vmatprep.subr.mxu0 0.0
    %1346 = vmatpush1.msra.mxu0 %v1205
    %1347 = vmatprep.subr.mxu0 0.0
    %1348 = vmatpush1.msra.mxu0 %v1206
    %1349 = vmatprep.mubr.f32.mxu0 %v1274
    %1350 = vmatmul.mubr.f32.gmra.mrb[0].mxu0 %v1267
    %v1351 = vpop.f32.mrb[0].mxu0
    %v1352 = vadd.f32 %v1228, %v1351
    %v1353 = vpop.f32.mrb[0].mxu0
    %1354 = vdwg.mxu0
    %1355 = vmatprep.subr.mxu0 0.0
    %1356 = vmatpush1.msra.mxu0 %v1207
    %1357 = vmatprep.subr.mxu0 0.0
    %1358 = vmatpush1.msra.mxu0 %v1208
    %1359 = vmatprep.subr.mxu0 0.0
    %1360 = vmatpush1.msra.mxu0 %v1209
    %1361 = vmatprep.subr.mxu0 0.0
    %1362 = vmatpush1.msra.mxu0 %v1210
    %1363 = vmatprep.subr.mxu0 0.0
    %1364 = vmatpush1.msra.mxu0 %v1211
    %1365 = vmatprep.subr.mxu0 0.0
    %1366 = vmatpush1.msra.mxu0 %v1212
    %1367 = vmatprep.subr.mxu0 0.0
    %1368 = vmatpush1.msra.mxu0 %v1213
    %1369 = vmatprep.subr.mxu0 0.0
    %1370 = vmatpush1.msra.mxu0 %v1214
    %1371 = vmatprep.subr.mxu0 0.0
    %1372 = vmatpush1.msra.mxu0 %v1215
    %1373 = vmatprep.subr.mxu0 0.0
    %1374 = vmatpush1.msra.mxu0 %v1216
    %1375 = vmatprep.subr.mxu0 0.0
    %1376 = vmatpush1.msra.mxu0 %v1217
    %1377 = vmatprep.subr.mxu0 0.0
    %1378 = vmatpush1.msra.mxu0 %v1218
    %1379 = vmatprep.subr.mxu0 0.0
    %1380 = vmatpush1.msra.mxu0 %v1219
    %1381 = vmatprep.subr.mxu0 0.0
    %1382 = vmatpush1.msra.mxu0 %v1220
    %1383 = vmatprep.subr.mxu0 0.0
    %1384 = vmatpush1.msra.mxu0 %v1221
    %1385 = vmatprep.subr.mxu0 0.0
    %1386 = vmatpush1.msra.mxu0 %v1222
    %1387 = vmatprep.subr.mxu0 0.0
    %1388 = vmatpush1.msra.mxu0 0.0
    %1389 = vmatprep.subr.mxu0 0.0
    %1390 = vmatpush1.msra.mxu0 0.0
    %1391 = vmatprep.subr.mxu0 0.0
    %1392 = vmatpush1.msra.mxu0 0.0
    %1393 = vmatprep.subr.mxu0 0.0
    %1394 = vmatpush1.msra.mxu0 0.0
    %1395 = vmatprep.subr.mxu0 0.0
    %1396 = vmatpush1.msra.mxu0 0.0
    %1397 = vmatprep.subr.mxu0 0.0
    %1398 = vmatpush1.msra.mxu0 0.0
    %1399 = vmatprep.subr.mxu0 0.0
    %1400 = vmatpush1.msra.mxu0 0.0
    %1401 = vmatprep.subr.mxu0 0.0
    %1402 = vmatpush1.msra.mxu0 0.0
    %1403 = vmatprep.subr.mxu0 0.0
    %1404 = vmatpush1.msra.mxu0 0.0
    %1405 = vmatprep.subr.mxu0 0.0
    %1406 = vmatpush1.msra.mxu0 0.0
    %1407 = vmatprep.subr.mxu0 0.0
    %1408 = vmatpush1.msra.mxu0 0.0
    %1409 = vmatprep.subr.mxu0 0.0
    %1410 = vmatpush1.msra.mxu0 0.0
    %1411 = vmatprep.subr.mxu0 0.0
    %1412 = vmatpush1.msra.mxu0 0.0
    %1413 = vmatprep.subr.mxu0 0.0
    %1414 = vmatpush1.msra.mxu0 0.0
    %1415 = vmatprep.subr.mxu0 0.0
    %1416 = vmatpush1.msra.mxu0 0.0
    %1417 = vmatprep.subr.mxu0 0.0
    %1418 = vmatpush1.msra.mxu0 0.0
    %1419 = vmatprep.mubr.f32.mxu0 0.0
    %1420 = vmatmul.mubr.f32.gmra.mrb[0].mxu0 %v1281
    %v1421 = vpop.f32.mrb[0].mxu0
    %v1422 = vadd.f32 %v1352, %v1421
    %v1423 = vpop.f32.mrb[0].mxu0
    %1424 = vdwg.mxu0
    %1425 = vst [vmem:[#allocation2] sm:$0x3] %v1422
    %v1428 = vunpack.c.l.s4 1983009808
    %v1429 = vunpack.c.0.s8 %v1428
    %v1430 = vlaneseq
    %v1431 = vshrl.u32 %v1430, 7
    %v1432 = vsub.s32 %v1429, %v1431
    %v1433 = vrot.slane %v1422, %v1432
    %v1434 = vcombine.high %v1433, %v1433
    %1436 = vst [vmem:[#allocation2 + $0x2] sm:$0x3] %v1434
    %v1437 = vcombine.high %v1422, %v1422
    %v1439 = vunpack.c.l.s4 1983009808
    %v1440 = vunpack.c.0.s8 %v1439
    %v1441 = vlaneseq
    %v1442 = vshrl.u32 %v1441, 7
    %v1443 = vsub.s32 %v1440, %v1442
    %v1444 = vrot.slane %v1437, %v1443
    %1446 = vst [vmem:[#allocation2 + $0x4] sm:$0x3] %v1444
    %v1447 = vcombine.high %v1444, %v1444
    %1449 = vst [vmem:[#allocation2 + $0x6] sm:$0x3] %v1447
    %v1450 = vld [vmem:[#allocation2] sm:$0xff]
    %v1451 = vld [vmem:[#allocation6] sm:$0xff]
    %v1452 = vld [vmem:[#allocation6 + $0x8] sm:$0xff]
    %v1453 = vld [vmem:[#allocation6 + $0x10] sm:$0xff]
    %v1454 = vld [vmem:[#allocation6 + $0x18] sm:$0xff]
    %v1455 = vld [vmem:[#allocation6 + $0x20] sm:$0xff]
    %v1456 = vld [vmem:[#allocation6 + $0x28] sm:$0xff]
    %v1457 = vld [vmem:[#allocation6 + $0x30] sm:$0xff]
    %v1458 = vld [vmem:[#allocation6 + $0x38] sm:$0xff]
    %v1459 = vld [vmem:[#allocation6 + $0x40] sm:$0xff]
    %v1460 = vld [vmem:[#allocation6 + $0x48] sm:$0xff]
    %v1461 = vld [vmem:[#allocation6 + $0x50] sm:$0xff]
    %v1462 = vld [vmem:[#allocation6 + $0x58] sm:$0xff]
    %v1463 = vld [vmem:[#allocation6 + $0x60] sm:$0xff]
    %v1464 = vld [vmem:[#allocation6 + $0x68] sm:$0xff]
    %v1465 = vld [vmem:[#allocation6 + $0x70] sm:$0xff]
    %v1466 = vld [vmem:[#allocation6 + $0x78] sm:$0xff]
    %v1467 = vld [vmem:[#allocation6 + $0x80] sm:$0xff]
    %v1468 = vld [vmem:[#allocation6 + $0x88] sm:$0xff]
    %v1469 = vld [vmem:[#allocation6 + $0x90] sm:$0xff]
    %v1470 = vld [vmem:[#allocation6 + $0x98] sm:$0xff]
    %v1471 = vld [vmem:[#allocation6 + $0xa0] sm:$0xff]
    %v1472 = vld [vmem:[#allocation6 + $0xa8] sm:$0xff]
    %v1473 = vld [vmem:[#allocation6 + $0xb0] sm:$0xff]
    %v1474 = vld [vmem:[#allocation6 + $0xb8] sm:$0xff]
    %v1475 = vld [vmem:[#allocation6 + $0xc0] sm:$0xff]
    %v1476 = vld [vmem:[#allocation6 + $0xc8] sm:$0xff]
    %v1477 = vld [vmem:[#allocation6 + $0xd0] sm:$0xff]
    %v1478 = vld [vmem:[#allocation6 + $0xd8] sm:$0xff]
    %v1479 = vld [vmem:[#allocation6 + $0xe0] sm:$0xff]
    %v1480 = vld [vmem:[#allocation6 + $0xe8] sm:$0xff]
    %v1481 = vld [vmem:[#allocation6 + $0xf0] sm:$0xff]
    %v1482 = vld [vmem:[#allocation6 + $0xf8] sm:$0xff]
    %v1483 = vld [vmem:[#allocation6 + $0x100] sm:$0xff]
    %v1484 = vld [vmem:[#allocation6 + $0x108] sm:$0xff]
    %v1485 = vld [vmem:[#allocation6 + $0x110] sm:$0xff]
    %v1486 = vld [vmem:[#allocation6 + $0x118] sm:$0xff]
    %v1487 = vld [vmem:[#allocation6 + $0x120] sm:$0xff]
    %v1488 = vld [vmem:[#allocation6 + $0x128] sm:$0xff]
    %v1489 = vld [vmem:[#allocation6 + $0x130] sm:$0xff]
    %v1490 = vld [vmem:[#allocation6 + $0x138] sm:$0xff]
    %v1491 = vld [vmem:[#allocation6 + $0x140] sm:$0xff]
    %v1492 = vld [vmem:[#allocation6 + $0x148] sm:$0xff]
    %v1493 = vld [vmem:[#allocation6 + $0x150] sm:$0xff]
    %v1494 = vld [vmem:[#allocation6 + $0x158] sm:$0xff]
    %v1495 = vld [vmem:[#allocation6 + $0x160] sm:$0xff]
    %v1496 = vld [vmem:[#allocation6 + $0x168] sm:$0xff]
    %v1497 = vld [vmem:[#allocation6 + $0x170] sm:$0xff]
    %v1498 = vld [vmem:[#allocation6 + $0x178] sm:$0xff]
    %v1499 = vld [vmem:[#allocation6 + $0x180] sm:$0xff]
    %v1500 = vld [vmem:[#allocation6 + $0x188] sm:$0xff]
    %v1501 = vld [vmem:[#allocation6 + $0x190] sm:$0xff]
    %v1502 = vld [vmem:[#allocation6 + $0x198] sm:$0xff]
    %v1503 = vld [vmem:[#allocation6 + $0x1a0] sm:$0xff]
    %v1504 = vld [vmem:[#allocation6 + $0x1a8] sm:$0xff]
    %v1505 = vld [vmem:[#allocation6 + $0x1b0] sm:$0xff]
    %v1506 = vld [vmem:[#allocation6 + $0x1b8] sm:$0xff]
    %v1507 = vld [vmem:[#allocation6 + $0x1c0] sm:$0xff]
    %v1508 = vld [vmem:[#allocation6 + $0x1c8] sm:$0xff]
    %v1509 = vld [vmem:[#allocation6 + $0x1d0] sm:$0xff]
    %v1510 = vld [vmem:[#allocation6 + $0x1d8] sm:$0xff]
    %v1511 = vld [vmem:[#allocation6 + $0x1e0] sm:$0xff]
    %v1512 = vld [vmem:[#allocation6 + $0x1e8] sm:$0xff]
    %v1513 = vld [vmem:[#allocation6 + $0x1f0] sm:$0xff]
    %v1514 = vld [vmem:[#allocation6 + $0x1f8] sm:$0xff]
    %v1515 = vld [vmem:[#allocation6 + $0x200] sm:$0xff]
    %v1516 = vld [vmem:[#allocation6 + $0x208] sm:$0xff]
    %v1517 = vld [vmem:[#allocation6 + $0x210] sm:$0xff]
    %v1518 = vld [vmem:[#allocation6 + $0x218] sm:$0xff]
    %v1519 = vld [vmem:[#allocation6 + $0x220] sm:$0xff]
    %v1520 = vld [vmem:[#allocation6 + $0x228] sm:$0xff]
    %v1521 = vld [vmem:[#allocation6 + $0x230] sm:$0xff]
    %v1522 = vld [vmem:[#allocation6 + $0x238] sm:$0xff]
    %v1523 = vld [vmem:[#allocation6 + $0x240] sm:$0xff]
    %v1524 = vld [vmem:[#allocation6 + $0x248] sm:$0xff]
    %v1525 = vld [vmem:[#allocation6 + $0x250] sm:$0xff]
    %v1526 = vld [vmem:[#allocation6 + $0x258] sm:$0xff]
    %v1527 = vld [vmem:[#allocation6 + $0x260] sm:$0xff]
    %v1528 = vld [vmem:[#allocation6 + $0x268] sm:$0xff]
    %v1529 = vld [vmem:[#allocation6 + $0x270] sm:$0xff]
    %v1530 = vld [vmem:[#allocation6 + $0x278] sm:$0xff]
    %v1531 = vld [vmem:[#allocation6 + $0x280] sm:$0xff]
    %v1532 = vld [vmem:[#allocation6 + $0x288] sm:$0xff]
    %v1533 = vld [vmem:[#allocation6 + $0x290] sm:$0xff]
    %v1534 = vld [vmem:[#allocation6 + $0x298] sm:$0xff]
    %v1535 = vld [vmem:[#allocation6 + $0x2a0] sm:$0xff]
    %v1536 = vld [vmem:[#allocation6 + $0x2a8] sm:$0xff]
    %v1537 = vld [vmem:[#allocation6 + $0x2b0] sm:$0xff]
    %v1538 = vld [vmem:[#allocation6 + $0x2b8] sm:$0xff]
    %v1539 = vld [vmem:[#allocation6 + $0x2c0] sm:$0xff]
    %v1540 = vld [vmem:[#allocation6 + $0x2c8] sm:$0xff]
    %v1541 = vld [vmem:[#allocation6 + $0x2d0] sm:$0xff]
    %v1542 = vld [vmem:[#allocation6 + $0x2d8] sm:$0xff]
    %v1543 = vld [vmem:[#allocation6 + $0x2e0] sm:$0xff]
    %v1544 = vld [vmem:[#allocation6 + $0x2e8] sm:$0xff]
    %v1545 = vld [vmem:[#allocation6 + $0x2f0] sm:$0xff]
    %v1546 = vld [vmem:[#allocation6 + $0x2f8] sm:$0xff]
    %v1547 = vld [vmem:[#allocation6 + $0x300] sm:$0xff]
    %v1548 = vld [vmem:[#allocation6 + $0x308] sm:$0xff]
    %v1549 = vld [vmem:[#allocation6 + $0x310] sm:$0xff]
    %v1550 = vld [vmem:[#allocation6 + $0x318] sm:$0xff]
    %v1551 = vld [vmem:[#allocation6 + $0x320] sm:$0xff]
    %v1552 = vld [vmem:[#allocation6 + $0x328] sm:$0xff]
    %v1553 = vld [vmem:[#allocation6 + $0x330] sm:$0xff]
    %v1554 = vld [vmem:[#allocation6 + $0x338] sm:$0xff]
    %v1555 = vld [vmem:[#allocation6 + $0x340] sm:$0xff]
    %v1556 = vld [vmem:[#allocation6 + $0x348] sm:$0xff]
    %v1557 = vld [vmem:[#allocation6 + $0x350] sm:$0xff]
    %v1558 = vld [vmem:[#allocation6 + $0x358] sm:$0xff]
    %v1559 = vld [vmem:[#allocation6 + $0x360] sm:$0xff]
    %v1560 = vld [vmem:[#allocation6 + $0x368] sm:$0xff]
    %v1561 = vld [vmem:[#allocation6 + $0x370] sm:$0xff]
    %v1562 = vld [vmem:[#allocation6 + $0x378] sm:$0xff]
    %v1563 = vld [vmem:[#allocation6 + $0x380] sm:$0xff]
    %v1564 = vld [vmem:[#allocation6 + $0x388] sm:$0xff]
    %v1565 = vld [vmem:[#allocation6 + $0x390] sm:$0xff]
    %v1566 = vld [vmem:[#allocation6 + $0x398] sm:$0xff]
    %v1567 = vld [vmem:[#allocation6 + $0x3a0] sm:$0xff]
    %v1568 = vld [vmem:[#allocation6 + $0x3a8] sm:$0xff]
    %v1569 = vld [vmem:[#allocation6 + $0x3b0] sm:$0xff]
    %v1570 = vld [vmem:[#allocation6 + $0x3b8] sm:$0xff]
    %v1571 = vld [vmem:[#allocation6 + $0x3c0] sm:$0xff]
    %v1572 = vld [vmem:[#allocation6 + $0x3c8] sm:$0xff]
    %v1573 = vld [vmem:[#allocation6 + $0x3d0] sm:$0xff]
    %v1574 = vld [vmem:[#allocation6 + $0x3d8] sm:$0xff]
    %v1575 = vld [vmem:[#allocation6 + $0x3e0] sm:$0xff]
    %v1576 = vld [vmem:[#allocation6 + $0x3e8] sm:$0xff]
    %v1577 = vld [vmem:[#allocation6 + $0x3f0] sm:$0xff]
    %v1578 = vld [vmem:[#allocation6 + $0x3f8] sm:$0xff]
    %v1579 = vld [vmem:[#allocation6 + $0x400] sm:$0xff]
    %v1580 = vld [vmem:[#allocation6 + $0x408] sm:$0xff]
    %v1581 = vld [vmem:[#allocation6 + $0x410] sm:$0xff]
    %v1582 = vld [vmem:[#allocation6 + $0x418] sm:$0xff]
    %v1583 = vld [vmem:[#allocation6 + $0x420] sm:$0xff]
    %v1584 = vld [vmem:[#allocation6 + $0x428] sm:$0xff]
    %v1585 = vld [vmem:[#allocation6 + $0x430] sm:$0xff]
    %v1586 = vld [vmem:[#allocation6 + $0x438] sm:$0xff]
    %v1587 = vld [vmem:[#allocation6 + $0x440] sm:$0xff]
    %v1588 = vld [vmem:[#allocation6 + $0x448] sm:$0xff]
    %v1589 = vld [vmem:[#allocation6 + $0x450] sm:$0xff]
    %v1590 = vld [vmem:[#allocation6 + $0x458] sm:$0xff]
    %v1591 = vld [vmem:[#allocation6 + $0x460] sm:$0xff]
    %v1592 = vld [vmem:[#allocation6 + $0x468] sm:$0xff]
    %v1593 = vld [vmem:[#allocation6 + $0x470] sm:$0xff]
    %v1594 = vld [vmem:[#allocation6 + $0x478] sm:$0xff]
    %v1595 = vld [vmem:[#allocation6 + $0x480] sm:$0xff]
    %v1596 = vld [vmem:[#allocation6 + $0x488] sm:$0xff]
    %v1597 = vld [vmem:[#allocation6 + $0x490] sm:$0xff]
    %v1598 = vld [vmem:[#allocation6 + $0x498] sm:$0xff]
    %v1599 = vld [vmem:[#allocation6 + $0x4a0] sm:$0xff]
    %v1600 = vld [vmem:[#allocation6 + $0x4a8] sm:$0xff]
    %v1601 = vld [vmem:[#allocation6 + $0x4b0] sm:$0xff]
    %v1602 = vld [vmem:[#allocation6 + $0x4b8] sm:$0xff]
    %v1603 = vld [vmem:[#allocation6 + $0x4c0] sm:$0xff]
    %v1604 = vld [vmem:[#allocation6 + $0x4c8] sm:$0xff]
    %v1605 = vld [vmem:[#allocation6 + $0x4d0] sm:$0xff]
    %v1606 = vld [vmem:[#allocation6 + $0x4d8] sm:$0xff]
    %v1607 = vld [vmem:[#allocation6 + $0x4e0] sm:$0xff]
    %v1608 = vld [vmem:[#allocation6 + $0x4e8] sm:$0xff]
    %v1609 = vld [vmem:[#allocation6 + $0x4f0] sm:$0xff]
    %v1610 = vld [vmem:[#allocation6 + $0x4f8] sm:$0xff]
    %v1611 = vld [vmem:[#allocation6 + $0x500] sm:$0xff]
    %v1612 = vld [vmem:[#allocation6 + $0x508] sm:$0xff]
    %v1613 = vld [vmem:[#allocation6 + $0x510] sm:$0xff]
    %v1614 = vld [vmem:[#allocation6 + $0x518] sm:$0xff]
    %v1615 = vld [vmem:[#allocation6 + $0x520] sm:$0xff]
    %v1616 = vld [vmem:[#allocation6 + $0x528] sm:$0xff]
    %v1617 = vld [vmem:[#allocation6 + $0x530] sm:$0xff]
    %v1618 = vld [vmem:[#allocation6 + $0x538] sm:$0xff]
    %v1619 = vld [vmem:[#allocation6 + $0x540] sm:$0xff]
    %v1620 = vld [vmem:[#allocation6 + $0x548] sm:$0xff]
    %v1621 = vld [vmem:[#allocation6 + $0x550] sm:$0xff]
    %v1622 = vld [vmem:[#allocation6 + $0x558] sm:$0xff]
    %v1623 = vld [vmem:[#allocation6 + $0x560] sm:$0xff]
    %v1624 = vld [vmem:[#allocation6 + $0x568] sm:$0xff]
    %v1625 = vld [vmem:[#allocation6 + $0x570] sm:$0xff]
    %v1626 = vld [vmem:[#allocation6 + $0x578] sm:$0xff]
    %v1627 = vld [vmem:[#allocation6 + $0x580] sm:$0xff]
    %v1628 = vld [vmem:[#allocation6 + $0x588] sm:$0xff]
    %v1629 = vld [vmem:[#allocation6 + $0x590] sm:$0xff]
    %v1630 = vld [vmem:[#allocation6 + $0x598] sm:$0xff]
    %v1631 = vld [vmem:[#allocation6 + $0x5a0] sm:$0xff]
    %v1632 = vld [vmem:[#allocation6 + $0x5a8] sm:$0xff]
    %v1633 = vld [vmem:[#allocation6 + $0x5b0] sm:$0xff]
    %v1634 = vld [vmem:[#allocation6 + $0x5b8] sm:$0xff]
    %v1635 = vld [vmem:[#allocation6 + $0x5c0] sm:$0xff]
    %v1636 = vld [vmem:[#allocation6 + $0x5c8] sm:$0xff]
    %v1637 = vld [vmem:[#allocation6 + $0x5d0] sm:$0xff]
    %v1638 = vld [vmem:[#allocation6 + $0x5d8] sm:$0xff]
    %v1639 = vld [vmem:[#allocation6 + $0x5e0] sm:$0xff]
    %v1640 = vld [vmem:[#allocation6 + $0x5e8] sm:$0xff]
    %v1641 = vld [vmem:[#allocation6 + $0x5f0] sm:$0xff]
    %v1642 = vld [vmem:[#allocation6 + $0x5f8] sm:$0xff]
    %v1643 = vld [vmem:[%s6] sm:$0x7]
    %v1645 = vlaneseq
    %v1646 = vshrl.u32 %v1645, 7
    %v1647 = vsub.s32 0, %v1646
    %v1648 = vrot.slane %v1643, %v1647
    %v1649 = vlaneseq
    %v1650 = vshrl.u32 %v1649, 7
    %v1651 = vsub.s32 1, %v1650
    %v1652 = vrot.slane %v1643, %v1651
    %v1653 = vlaneseq
    %v1654 = vshrl.u32 %v1653, 7
    %v1655 = vsub.s32 2, %v1654
    %v1656 = vrot.slane %v1643, %v1655
    %v1661 = vcombine.high %v1450, %v1450
    %v1663 = vunpack.c.l.s4 1983009808
    %v1664 = vunpack.c.0.s8 %v1663
    %v1665 = vlaneseq
    %v1666 = vshrl.u32 %v1665, 7
    %v1667 = vsub.s32 %v1664, %v1666
    %v1668 = vrot.slane %v1450, %v1667
    %v1670 = vunpack.c.l.s4 1983009808
    %v1671 = vunpack.c.0.s8 %v1670
    %v1672 = vlaneseq
    %v1673 = vshrl.u32 %v1672, 7
    %v1674 = vsub.s32 %v1671, %v1673
    %v1675 = vrot.slane %v1661, %v1674
    %v1676 = vcombine.high %v1668, %v1668
    %v1677 = vcombine.high %v1675, %v1675
    %1682 = vmatprep.subr.mxu0 %v1452
    %1683 = vmatpush1.msra.mxu0 %v1451
    %1684 = vmatprep.subr.mxu0 %v1455
    %1685 = vmatpush1.msra.mxu0 %v1454
    %1686 = vmatprep.subr.mxu0 %v1458
    %1687 = vmatpush1.msra.mxu0 %v1457
    %1688 = vmatprep.subr.mxu0 %v1461
    %1689 = vmatpush1.msra.mxu0 %v1460
    %1690 = vmatprep.subr.mxu0 %v1464
    %1691 = vmatpush1.msra.mxu0 %v1463
    %1692 = vmatprep.subr.mxu0 %v1467
    %1693 = vmatpush1.msra.mxu0 %v1466
    %1694 = vmatprep.subr.mxu0 %v1470
    %1695 = vmatpush1.msra.mxu0 %v1469
    %1696 = vmatprep.subr.mxu0 %v1473
    %1697 = vmatpush1.msra.mxu0 %v1472
    %1698 = vmatprep.subr.mxu0 %v1476
    %1699 = vmatpush1.msra.mxu0 %v1475
    %1700 = vmatprep.subr.mxu0 %v1479
    %1701 = vmatpush1.msra.mxu0 %v1478
    %1702 = vmatprep.subr.mxu0 %v1482
    %1703 = vmatpush1.msra.mxu0 %v1481
    %1704 = vmatprep.subr.mxu0 %v1485
    %1705 = vmatpush1.msra.mxu0 %v1484
    %1706 = vmatprep.subr.mxu0 %v1488
    %1707 = vmatpush1.msra.mxu0 %v1487
    %1708 = vmatprep.subr.mxu0 %v1491
    %1709 = vmatpush1.msra.mxu0 %v1490
    %1710 = vmatprep.subr.mxu0 %v1494
    %1711 = vmatpush1.msra.mxu0 %v1493
    %1712 = vmatprep.subr.mxu0 %v1497
    %1713 = vmatpush1.msra.mxu0 %v1496
    %1714 = vmatprep.subr.mxu0 %v1500
    %1715 = vmatpush1.msra.mxu0 %v1499
    %1716 = vmatprep.subr.mxu0 %v1503
    %1717 = vmatpush1.msra.mxu0 %v1502
    %1718 = vmatprep.subr.mxu0 %v1506
    %1719 = vmatpush1.msra.mxu0 %v1505
    %1720 = vmatprep.subr.mxu0 %v1509
    %1721 = vmatpush1.msra.mxu0 %v1508
    %1722 = vmatprep.subr.mxu0 %v1512
    %1723 = vmatpush1.msra.mxu0 %v1511
    %1724 = vmatprep.subr.mxu0 %v1515
    %1725 = vmatpush1.msra.mxu0 %v1514
    %1726 = vmatprep.subr.mxu0 %v1518
    %1727 = vmatpush1.msra.mxu0 %v1517
    %1728 = vmatprep.subr.mxu0 %v1521
    %1729 = vmatpush1.msra.mxu0 %v1520
    %1730 = vmatprep.subr.mxu0 %v1524
    %1731 = vmatpush1.msra.mxu0 %v1523
    %1732 = vmatprep.subr.mxu0 %v1527
    %1733 = vmatpush1.msra.mxu0 %v1526
    %1734 = vmatprep.subr.mxu0 %v1530
    %1735 = vmatpush1.msra.mxu0 %v1529
    %1736 = vmatprep.subr.mxu0 %v1533
    %1737 = vmatpush1.msra.mxu0 %v1532
    %1738 = vmatprep.subr.mxu0 %v1536
    %1739 = vmatpush1.msra.mxu0 %v1535
    %1740 = vmatprep.subr.mxu0 %v1539
    %1741 = vmatpush1.msra.mxu0 %v1538
    %1742 = vmatprep.subr.mxu0 %v1542
    %1743 = vmatpush1.msra.mxu0 %v1541
    %1744 = vmatprep.subr.mxu0 %v1545
    %1745 = vmatpush1.msra.mxu0 %v1544
    %1746 = vmatprep.mubr.f32.mxu0 %v1676
    %1747 = vmatmul.mubr.f32.gmra.mrb[0].mxu0 %v1668
    %v1748 = vpop.f32.mrb[0].mxu0
    %v1749 = vadd.f32 %v1648, %v1748
    %v1750 = vpop.f32.mrb[0].mxu0
    %v1751 = vadd.f32 %v1652, %v1750
    %1752 = vdwg.mxu0
    %1753 = vmatprep.subr.mxu0 %v1548
    %1754 = vmatpush1.msra.mxu0 %v1547
    %1755 = vmatprep.subr.mxu0 %v1551
    %1756 = vmatpush1.msra.mxu0 %v1550
    %1757 = vmatprep.subr.mxu0 %v1554
    %1758 = vmatpush1.msra.mxu0 %v1553
    %1759 = vmatprep.subr.mxu0 %v1557
    %1760 = vmatpush1.msra.mxu0 %v1556
    %1761 = vmatprep.subr.mxu0 %v1560
    %1762 = vmatpush1.msra.mxu0 %v1559
    %1763 = vmatprep.subr.mxu0 %v1563
    %1764 = vmatpush1.msra.mxu0 %v1562
    %1765 = vmatprep.subr.mxu0 %v1566
    %1766 = vmatpush1.msra.mxu0 %v1565
    %1767 = vmatprep.subr.mxu0 %v1569
    %1768 = vmatpush1.msra.mxu0 %v1568
    %1769 = vmatprep.subr.mxu0 %v1572
    %1770 = vmatpush1.msra.mxu0 %v1571
    %1771 = vmatprep.subr.mxu0 %v1575
    %1772 = vmatpush1.msra.mxu0 %v1574
    %1773 = vmatprep.subr.mxu0 %v1578
    %1774 = vmatpush1.msra.mxu0 %v1577
    %1775 = vmatprep.subr.mxu0 %v1581
    %1776 = vmatpush1.msra.mxu0 %v1580
    %1777 = vmatprep.subr.mxu0 %v1584
    %1778 = vmatpush1.msra.mxu0 %v1583
    %1779 = vmatprep.subr.mxu0 %v1587
    %1780 = vmatpush1.msra.mxu0 %v1586
    %1781 = vmatprep.subr.mxu0 %v1590
    %1782 = vmatpush1.msra.mxu0 %v1589
    %1783 = vmatprep.subr.mxu0 %v1593
    %1784 = vmatpush1.msra.mxu0 %v1592
    %1785 = vmatprep.subr.mxu0 %v1596
    %1786 = vmatpush1.msra.mxu0 %v1595
    %1787 = vmatprep.subr.mxu0 %v1599
    %1788 = vmatpush1.msra.mxu0 %v1598
    %1789 = vmatprep.subr.mxu0 %v1602
    %1790 = vmatpush1.msra.mxu0 %v1601
    %1791 = vmatprep.subr.mxu0 %v1605
    %1792 = vmatpush1.msra.mxu0 %v1604
    %1793 = vmatprep.subr.mxu0 %v1608
    %1794 = vmatpush1.msra.mxu0 %v1607
    %1795 = vmatprep.subr.mxu0 %v1611
    %1796 = vmatpush1.msra.mxu0 %v1610
    %1797 = vmatprep.subr.mxu0 %v1614
    %1798 = vmatpush1.msra.mxu0 %v1613
    %1799 = vmatprep.subr.mxu0 %v1617
    %1800 = vmatpush1.msra.mxu0 %v1616
    %1801 = vmatprep.subr.mxu0 %v1620
    %1802 = vmatpush1.msra.mxu0 %v1619
    %1803 = vmatprep.subr.mxu0 %v1623
    %1804 = vmatpush1.msra.mxu0 %v1622
    %1805 = vmatprep.subr.mxu0 %v1626
    %1806 = vmatpush1.msra.mxu0 %v1625
    %1807 = vmatprep.subr.mxu0 %v1629
    %1808 = vmatpush1.msra.mxu0 %v1628
    %1809 = vmatprep.subr.mxu0 %v1632
    %1810 = vmatpush1.msra.mxu0 %v1631
    %1811 = vmatprep.subr.mxu0 %v1635
    %1812 = vmatpush1.msra.mxu0 %v1634
    %1813 = vmatprep.subr.mxu0 %v1638
    %1814 = vmatpush1.msra.mxu0 %v1637
    %1815 = vmatprep.subr.mxu0 %v1641
    %1816 = vmatpush1.msra.mxu0 %v1640
    %1817 = vmatprep.mubr.f32.mxu0 %v1677
    %1818 = vmatmul.mubr.f32.gmra.mrb[0].mxu0 %v1675
    %v1819 = vpop.f32.mrb[0].mxu0
    %v1820 = vadd.f32 %v1749, %v1819
    %v1821 = vpop.f32.mrb[0].mxu0
    %v1822 = vadd.f32 %v1751, %v1821
    %1823 = vdwg.mxu0
    %1824 = vmatprep.subr.mxu0 0.0
    %1825 = vmatpush1.msra.mxu0 %v1453
    %1826 = vmatprep.subr.mxu0 0.0
    %1827 = vmatpush1.msra.mxu0 %v1456
    %1828 = vmatprep.subr.mxu0 0.0
    %1829 = vmatpush1.msra.mxu0 %v1459
    %1830 = vmatprep.subr.mxu0 0.0
    %1831 = vmatpush1.msra.mxu0 %v1462
    %1832 = vmatprep.subr.mxu0 0.0
    %1833 = vmatpush1.msra.mxu0 %v1465
    %1834 = vmatprep.subr.mxu0 0.0
    %1835 = vmatpush1.msra.mxu0 %v1468
    %1836 = vmatprep.subr.mxu0 0.0
    %1837 = vmatpush1.msra.mxu0 %v1471
    %1838 = vmatprep.subr.mxu0 0.0
    %1839 = vmatpush1.msra.mxu0 %v1474
    %1840 = vmatprep.subr.mxu0 0.0
    %1841 = vmatpush1.msra.mxu0 %v1477
    %1842 = vmatprep.subr.mxu0 0.0
    %1843 = vmatpush1.msra.mxu0 %v1480
    %1844 = vmatprep.subr.mxu0 0.0
    %1845 = vmatpush1.msra.mxu0 %v1483
    %1846 = vmatprep.subr.mxu0 0.0
    %1847 = vmatpush1.msra.mxu0 %v1486
    %1848 = vmatprep.subr.mxu0 0.0
    %1849 = vmatpush1.msra.mxu0 %v1489
    %1850 = vmatprep.subr.mxu0 0.0
    %1851 = vmatpush1.msra.mxu0 %v1492
    %1852 = vmatprep.subr.mxu0 0.0
    %1853 = vmatpush1.msra.mxu0 %v1495
    %1854 = vmatprep.subr.mxu0 0.0
    %1855 = vmatpush1.msra.mxu0 %v1498
    %1856 = vmatprep.subr.mxu0 0.0
    %1857 = vmatpush1.msra.mxu0 %v1501
    %1858 = vmatprep.subr.mxu0 0.0
    %1859 = vmatpush1.msra.mxu0 %v1504
    %1860 = vmatprep.subr.mxu0 0.0
    %1861 = vmatpush1.msra.mxu0 %v1507
    %1862 = vmatprep.subr.mxu0 0.0
    %1863 = vmatpush1.msra.mxu0 %v1510
    %1864 = vmatprep.subr.mxu0 0.0
    %1865 = vmatpush1.msra.mxu0 %v1513
    %1866 = vmatprep.subr.mxu0 0.0
    %1867 = vmatpush1.msra.mxu0 %v1516
    %1868 = vmatprep.subr.mxu0 0.0
    %1869 = vmatpush1.msra.mxu0 %v1519
    %1870 = vmatprep.subr.mxu0 0.0
    %1871 = vmatpush1.msra.mxu0 %v1522
    %1872 = vmatprep.subr.mxu0 0.0
    %1873 = vmatpush1.msra.mxu0 %v1525
    %1874 = vmatprep.subr.mxu0 0.0
    %1875 = vmatpush1.msra.mxu0 %v1528
    %1876 = vmatprep.subr.mxu0 0.0
    %1877 = vmatpush1.msra.mxu0 %v1531
    %1878 = vmatprep.subr.mxu0 0.0
    %1879 = vmatpush1.msra.mxu0 %v1534
    %1880 = vmatprep.subr.mxu0 0.0
    %1881 = vmatpush1.msra.mxu0 %v1537
    %1882 = vmatprep.subr.mxu0 0.0
    %1883 = vmatpush1.msra.mxu0 %v1540
    %1884 = vmatprep.subr.mxu0 0.0
    %1885 = vmatpush1.msra.mxu0 %v1543
    %1886 = vmatprep.subr.mxu0 0.0
    %1887 = vmatpush1.msra.mxu0 %v1546
    %1888 = vmatprep.mubr.f32.mxu0 %v1676
    %1889 = vmatmul.mubr.f32.gmra.mrb[0].mxu0 %v1668
    %v1890 = vpop.f32.mrb[0].mxu0
    %v1891 = vadd.f32 %v1656, %v1890
    %v1892 = vpop.f32.mrb[0].mxu0
    %1893 = vdwg.mxu0
    %1894 = vmatprep.subr.mxu0 0.0
    %1895 = vmatpush1.msra.mxu0 %v1549
    %1896 = vmatprep.subr.mxu0 0.0
    %1897 = vmatpush1.msra.mxu0 %v1552
    %1898 = vmatprep.subr.mxu0 0.0
    %1899 = vmatpush1.msra.mxu0 %v1555
    %1900 = vmatprep.subr.mxu0 0.0
    %1901 = vmatpush1.msra.mxu0 %v1558
    %1902 = vmatprep.subr.mxu0 0.0
    %1903 = vmatpush1.msra.mxu0 %v1561
    %1904 = vmatprep.subr.mxu0 0.0
    %1905 = vmatpush1.msra.mxu0 %v1564
    %1906 = vmatprep.subr.mxu0 0.0
    %1907 = vmatpush1.msra.mxu0 %v1567
    %1908 = vmatprep.subr.mxu0 0.0
    %1909 = vmatpush1.msra.mxu0 %v1570
    %1910 = vmatprep.subr.mxu0 0.0
    %1911 = vmatpush1.msra.mxu0 %v1573
    %1912 = vmatprep.subr.mxu0 0.0
    %1913 = vmatpush1.msra.mxu0 %v1576
    %1914 = vmatprep.subr.mxu0 0.0
    %1915 = vmatpush1.msra.mxu0 %v1579
    %1916 = vmatprep.subr.mxu0 0.0
    %1917 = vmatpush1.msra.mxu0 %v1582
    %1918 = vmatprep.subr.mxu0 0.0
    %1919 = vmatpush1.msra.mxu0 %v1585
    %1920 = vmatprep.subr.mxu0 0.0
    %1921 = vmatpush1.msra.mxu0 %v1588
    %1922 = vmatprep.subr.mxu0 0.0
    %1923 = vmatpush1.msra.mxu0 %v1591
    %1924 = vmatprep.subr.mxu0 0.0
    %1925 = vmatpush1.msra.mxu0 %v1594
    %1926 = vmatprep.subr.mxu0 0.0
    %1927 = vmatpush1.msra.mxu0 %v1597
    %1928 = vmatprep.subr.mxu0 0.0
    %1929 = vmatpush1.msra.mxu0 %v1600
    %1930 = vmatprep.subr.mxu0 0.0
    %1931 = vmatpush1.msra.mxu0 %v1603
    %1932 = vmatprep.subr.mxu0 0.0
    %1933 = vmatpush1.msra.mxu0 %v1606
    %1934 = vmatprep.subr.mxu0 0.0
    %1935 = vmatpush1.msra.mxu0 %v1609
    %1936 = vmatprep.subr.mxu0 0.0
    %1937 = vmatpush1.msra.mxu0 %v1612
    %1938 = vmatprep.subr.mxu0 0.0
    %1939 = vmatpush1.msra.mxu0 %v1615
    %1940 = vmatprep.subr.mxu0 0.0
    %1941 = vmatpush1.msra.mxu0 %v1618
    %1942 = vmatprep.subr.mxu0 0.0
    %1943 = vmatpush1.msra.mxu0 %v1621
    %1944 = vmatprep.subr.mxu0 0.0
    %1945 = vmatpush1.msra.mxu0 %v1624
    %1946 = vmatprep.subr.mxu0 0.0
    %1947 = vmatpush1.msra.mxu0 %v1627
    %1948 = vmatprep.subr.mxu0 0.0
    %1949 = vmatpush1.msra.mxu0 %v1630
    %1950 = vmatprep.subr.mxu0 0.0
    %1951 = vmatpush1.msra.mxu0 %v1633
    %1952 = vmatprep.subr.mxu0 0.0
    %1953 = vmatpush1.msra.mxu0 %v1636
    %1954 = vmatprep.subr.mxu0 0.0
    %1955 = vmatpush1.msra.mxu0 %v1639
    %1956 = vmatprep.subr.mxu0 0.0
    %1957 = vmatpush1.msra.mxu0 %v1642
    %1958 = vmatprep.mubr.f32.mxu0 %v1677
    %1959 = vmatmul.mubr.f32.gmra.mrb[0].mxu0 %v1675
    %v1960 = vpop.f32.mrb[0].mxu0
    %v1961 = vadd.f32 %v1891, %v1960
    %v1962 = vpop.f32.mrb[0].mxu0
    %1963 = vdwg.mxu0
    %v1964 = vmax.f32 %v1820, 0.0
    %v1965 = vmax.f32 %v1822, 0.0
    %v1966 = vmax.f32 %v1961, 0.0
    %v1970 = vcombine.low %v1964, %v1965
    %v1972 = vunpack.c.l.s4 1983009808
    %v1973 = vunpack.c.0.s8 %v1972
    %v1974 = vlaneseq
    %v1975 = vshrl.u32 %v1974, 7
    %v1976 = vsub.s32 %v1973, %v1975
    %v1977 = vrot.slane %v1970, %v1976
    %v1979 = vunpack.c.l.s4 1983009808
    %v1980 = vunpack.c.0.s8 %v1979
    %v1981 = vlaneseq
    %v1982 = vshrl.u32 %v1981, 7
    %v1983 = vsub.s32 %v1980, %v1982
    %v1984 = vrot.slane %v1966, %v1983
    %v1985 = vcombine.low %v1977, %v1984
    %1987 = vst [vmem:[#allocation8] sm:$0x3f] %v1985
    // Predicated region
    $region38: #{tpu_custom_call.1} parent=1 // pred_check
      _
    $region39: #{tpu_custom_call.1} parent=1 // pred_check_branch
      %1989 = sbr.rel (0) target = $region41
    $region40: #{tpu_custom_call.1} parent=1 // pred_region
      %s1991 = ssub.s32 96, 96
      %1992 = vsyncadd [#allocation5], %s1991
      %s1994 = sshll.u32 [#allocation8], 4
      %s1995 = int_to_ptr.vmem [resolvable:$true] %s1994
      %1997 = dma.vmem_to_hbm [thread:$0]  %s1995, 96, %s7, [#allocation5]
    $region41: #{tpu_custom_call.1} parent=1 // pred_fallthru
      _
    // Predicated region
    $region42: #{tpu_custom_call.1} parent=1 // pred_check
      _
    $region43: #{tpu_custom_call.1} parent=1 // pred_check_branch
      %1999 = sbr.rel (0) target = $region45
    $region44: #{tpu_custom_call.1} parent=1 // pred_region
      %2000 = dma.done [#allocation5], 96
    $region45: #{tpu_custom_call.1} parent=1 // pred_fallthru
      _
    %2001 = vsyncpa [#allocation4], 1
    %2002 = vsyncpa [#allocation7], 1
    %2003 = vsyncpa [#allocation5], 1

</llo_original>
